<compile_context>
chip_gen: v7x
topology: tpu7x:2x2x1
jax: 0.10.0
libtpu: 0.0.40
codegen_flags: <defaults>
</compile_context>

<pallas_src>
import functools

import jax
import jax.numpy as jnp
from jax.experimental import pallas as pl
from jax.experimental.pallas import tpu as pltpu

_BN_EPS = 1e-5
_VMEM_LIMIT_BYTES = 32 * 1024 * 1024  # explicit scoped-VMEM budget (safe on v5e/v6e/v7x)


def _itemsize(dtype):
    return jnp.finfo(dtype).bits // 8


# ---------------------------------------------------------------------------
# Kernels
# ---------------------------------------------------------------------------
def _conv_stats_kernel(x_ref, w_ref, z_ref, sum_ref, sumsq_ref):
    """First layer: z = W @ x_tile; accumulate per-channel sum / sum-of-squares.

    x_ref: (Cin, TILE_L)   w_ref: (Cout, Cin)   z_ref: (Cout, TILE_L)
    sum_ref / sumsq_ref: (Cout, 1) accumulators, resident across the whole grid.
    Padded L columns of x are zero, so they contribute nothing to the stats
    (valid because the conv bias is dropped).
    """
    @pl.when((pl.program_id(0) == 0) & (pl.program_id(1) == 0))
    def _init():
        sum_ref[...] = jnp.zeros_like(sum_ref)
        sumsq_ref[...] = jnp.zeros_like(sumsq_ref)

    z = jnp.dot(w_ref[...], x_ref[...], preferred_element_type=jnp.float32)
    z_ref[...] = z.astype(z_ref.dtype)
    sum_ref[...] += jnp.sum(z, axis=1, keepdims=True)
    sumsq_ref[...] += jnp.sum(z * z, axis=1, keepdims=True)


def _bn_scale_shift(sum_p, sumsq_p, gamma, beta, count, eps):
    """Fold batch-stat BN into per-channel scale/shift:  y = z*scale + shift."""
    inv_count = jnp.float32(1.0 / count)
    mean = sum_p * inv_count
    # Biased variance via E[z^2] - E[z]^2, accumulated in f32; clamp tiny
    # negative values caused by cancellation.
    var = jnp.maximum(sumsq_p * inv_count - mean * mean, 0.0)
    rstd = jax.lax.rsqrt(var + jnp.float32(eps))
    scale = gamma * rstd
    shift = beta - mean * scale
    return scale, shift


def _bn_relu_conv_stats_kernel(sum_p_ref, sumsq_p_ref, gamma_ref, beta_ref,
                               zin_ref, w_ref, zout_ref, sum_ref, sumsq_ref,
                               *, count, eps, l_true, tile_l, need_mask):
    """Fused: BN+ReLU of layer i-1, 1x1 conv of layer i, stats of layer i."""
    @pl.when((pl.program_id(0) == 0) & (pl.program_id(1) == 0))
    def _init():
        sum_ref[...] = jnp.zeros_like(sum_ref)
        sumsq_ref[...] = jnp.zeros_like(sumsq_ref)

    scale, shift = _bn_scale_shift(sum_p_ref[...], sumsq_p_ref[...],
                                   gamma_ref[...], beta_ref[...], count, eps)
    zin = zin_ref[...].astype(jnp.float32)                 # (Cprev, TILE_L)
    y = jnp.maximum(zin * scale + shift, 0.0)              # BN + ReLU, f32
    z = jnp.dot(w_ref[...], y, preferred_element_type=jnp.float32)
    zout_ref[...] = z.astype(zout_ref.dtype)

    if need_mask:
        # Exclude padded L columns (they hold garbage after normalization).
        col = (pl.program_id(1) * tile_l
               + jax.lax.broadcasted_iota(jnp.int32, z.shape, 1))
        z = jnp.where(col < l_true, z, 0.0)
    sum_ref[...] += jnp.sum(z, axis=1, keepdims=True)
    sumsq_ref[...] += jnp.sum(z * z, axis=1, keepdims=True)


def _bn_relu_kernel(sum_p_ref, sumsq_p_ref, gamma_ref, beta_ref, zin_ref, y_ref,
                    *, count, eps):
    """Final pass: BN + ReLU of the last layer (fully parallel over tiles)."""
    scale, shift = _bn_scale_shift(sum_p_ref[...], sumsq_p_ref[...],
                                   gamma_ref[...], beta_ref[...], count, eps)
    zin = zin_ref[...].astype(jnp.float32)
    y_ref[...] = jnp.maximum(zin * scale + shift, 0.0).astype(y_ref.dtype)


# ---------------------------------------------------------------------------
# pallas_call wrappers
# ---------------------------------------------------------------------------
def _call_conv_stats(x, w, tile_l, act_dtype):
    n, cin, lp = x.shape
    cout = w.shape[0]
    grid = (n, lp // tile_l)
    cost = pl.CostEstimate(
        flops=2 * n * lp * cin * cout,
        transcendentals=0,
        bytes_accessed=(x.size * x.dtype.itemsize + w.size * w.dtype.itemsize
                        + n * cout * lp * _itemsize(act_dtype)))
    return pl.pallas_call(
        _conv_stats_kernel,
        out_shape=(jax.ShapeDtypeStruct((n, cout, lp), act_dtype),
                   jax.ShapeDtypeStruct((cout, 1), jnp.float32),
                   jax.ShapeDtypeStruct((cout, 1), jnp.float32)),
        grid=grid,
        in_specs=[pl.BlockSpec((None, cin, tile_l), lambda i, j: (i, 0, j)),
                  pl.BlockSpec((cout, cin), lambda i, j: (0, 0))],
        out_specs=(pl.BlockSpec((None, cout, tile_l), lambda i, j: (i, 0, j)),
                   pl.BlockSpec((cout, 1), lambda i, j: (0, 0)),
                   pl.BlockSpec((cout, 1), lambda i, j: (0, 0))),
        compiler_params=pltpu.CompilerParams(
            dimension_semantics=("arbitrary", "arbitrary"),  # stats reduce over grid
            vmem_limit_bytes=_VMEM_LIMIT_BYTES),
        cost_estimate=cost,
    )(x, w)


def _call_bn_relu_conv_stats(stats_prev, gamma_p, beta_p, z_prev, w,
                             tile_l, act_dtype, count, l_true):
    sum_p, sumsq_p = stats_prev
    n, cprev, lp = z_prev.shape
    cout = w.shape[0]
    grid = (n, lp // tile_l)
    kernel = functools.partial(
        _bn_relu_conv_stats_kernel, count=count, eps=_BN_EPS,
        l_true=l_true, tile_l=tile_l, need_mask=(lp != l_true))
    cost = pl.CostEstimate(
        flops=2 * n * lp * cprev * cout + 4 * n * lp * cprev,
        transcendentals=0,
        bytes_accessed=(z_prev.size * z_prev.dtype.itemsize
                        + w.size * w.dtype.itemsize
                        + n * cout * lp * _itemsize(act_dtype)))
    small = lambda c: pl.BlockSpec((c, 1), lambda i, j: (0, 0))
    return pl.pallas_call(
        kernel,
        out_shape=(jax.ShapeDtypeStruct((n, cout, lp), act_dtype),
                   jax.ShapeDtypeStruct((cout, 1), jnp.float32),
                   jax.ShapeDtypeStruct((cout, 1), jnp.float32)),
        grid=grid,
        in_specs=[small(cprev), small(cprev), small(cprev), small(cprev),
                  pl.BlockSpec((None, cprev, tile_l), lambda i, j: (i, 0, j)),
                  pl.BlockSpec((cout, cprev), lambda i, j: (0, 0))],
        out_specs=(pl.BlockSpec((None, cout, tile_l), lambda i, j: (i, 0, j)),
                   small(cout), small(cout)),
        compiler_params=pltpu.CompilerParams(
            dimension_semantics=("arbitrary", "arbitrary"),
            vmem_limit_bytes=_VMEM_LIMIT_BYTES),
        cost_estimate=cost,
    )(sum_p, sumsq_p, gamma_p, beta_p, z_prev, w)


def _call_bn_relu(stats_prev, gamma, beta, z_prev, tile_l, out_dtype, count):
    sum_p, sumsq_p = stats_prev
    n, c, lp = z_prev.shape
    grid = (n, lp // tile_l)
    kernel = functools.partial(_bn_relu_kernel, count=count, eps=_BN_EPS)
    cost = pl.CostEstimate(
        flops=4 * n * lp * c, transcendentals=0,
        bytes_accessed=(z_prev.size * z_prev.dtype.itemsize
                        + n * c * lp * _itemsize(out_dtype)))
    small = pl.BlockSpec((c, 1), lambda i, j: (0, 0))
    return pl.pallas_call(
        kernel,
        out_shape=jax.ShapeDtypeStruct((n, c, lp), out_dtype),
        grid=grid,
        in_specs=[small, small, small, small,
                  pl.BlockSpec((None, c, tile_l), lambda i, j: (i, 0, j))],
        out_specs=pl.BlockSpec((None, c, tile_l), lambda i, j: (i, 0, j)),
        compiler_params=pltpu.CompilerParams(
            # No cross-tile reduction here -> both axes parallel (v7x megacore).
            dimension_semantics=("parallel", "parallel"),
            vmem_limit_bytes=_VMEM_LIMIT_BYTES),
        cost_estimate=cost,
    )(sum_p, sumsq_p, gamma, beta, z_prev)


# ---------------------------------------------------------------------------
# Parameters & forward pass
# ---------------------------------------------------------------------------
def init_mlp_params(key, in_channel, conv_channels, bias=True):
    """Parameters mirroring BasicBlock1D.init_weights().

    Conv weight: kaiming_normal_(fan_out) => std = sqrt(2 / (out_channels * k)).
    The conv bias (if any) is initialized to 0 and is in any case exactly
    cancelled by the training-mode BatchNorm that follows, so it is not
    materialized.  bn.weight = 1, bn.bias = 0.
    """
    del bias  # no effect on the forward pass under training-mode BN
    params = []
    prev = in_channel
    for cout in conv_channels:
        key, wkey = jax.random.split(key)
        std = (2.0 / cout) ** 0.5
        # PyTorch conv weight is (Cout, Cin, 1); store it as (Cout, Cin).
        w = jax.random.normal(wkey, (cout, prev), dtype=jnp.float32) * std
        gamma = jnp.ones((cout, 1), dtype=jnp.float32)   # bn.weight
        beta = jnp.zeros((cout, 1), dtype=jnp.float32)   # bn.bias
        params.append((w, gamma, beta))
        prev = cout
    return params


def mlp_forward(x_ncl, params, *, tile_l=2048, act_dtype=jnp.float32):
    """x_ncl: (N, C_in, L) float32 -> (N, C_out_last, L); matches MLP.forward."""
    assert len(params) >= 1
    n, _, l = x_ncl.shape
    count = n * l  # BatchNorm statistics are over all N*L positions

    if l <= tile_l:
        tl, l_pad = l, l              # single full-extent L tile (always legal)
    else:
        assert tile_l % 128 == 0, "tile_l must be a multiple of 128 lanes"
        tl = tile_l
        l_pad = ((l + tl - 1) // tl) * tl
    x = x_ncl if l_pad == l else jnp.pad(x_ncl, ((0, 0), (0, 0), (0, l_pad - l)))

    # Layer 0: conv + stats.
    w0, _, _ = params[0]
    z, s, ss = _call_conv_stats(x, w0, tl, act_dtype)

    # Layers 1..n-1: fused (BN+ReLU of layer i-1) + conv_i + stats_i.
    for i in range(1, len(params)):
        w, _, _ = params[i]
        _, gamma_p, beta_p = params[i - 1]
        z, s, ss = _call_bn_relu_conv_stats((s, ss), gamma_p, beta_p, z, w,
                                            tl, act_dtype, count, l)

    # Final BN + ReLU of the last layer, already in NCL layout.
    _, gamma_last, beta_last = params[-1]
    y = _call_bn_relu((s, ss), gamma_last, beta_last, z, tl, x_ncl.dtype, count)
    return y if l_pad == l else y[:, :, :l]


if __name__ == "__main__":
    # Small shapes consistent with the module (default would be 128, (256, 256)).
    N, L = 2, 16
    in_channel = 8
    conv_channels = (16, 32)

    key = jax.random.PRNGKey(0)
    key, xkey, pkey = jax.random.split(key, 3)
    x = jax.random.normal(xkey, (N, in_channel, L), dtype=jnp.float32)
    params = init_mlp_params(pkey, in_channel, conv_channels, bias=True)

    fwd = jax.jit(mlp_forward)
    out = jax.block_until_ready(fwd(x, params))

    assert out.shape == (N, conv_channels[-1], L), out.shape
    assert out.dtype == jnp.float32
    assert bool(jnp.all(jnp.isfinite(out)))
    assert bool(jnp.all(out >= 0.0))  # ReLU output

    # Pure-JAX reference with identical semantics: Conv1d(k=1) -> BN(train) -> ReLU.
    def ref_forward(h, ps):
        for w, gamma, beta in ps:
            z = jnp.einsum('oc,ncl->nol', w, h)
            mean = jnp.mean(z, axis=(0, 2), keepdims=True)
            var = jnp.mean((z - mean) ** 2, axis=(0, 2), keepdims=True)
            zh = (z - mean) * jax.lax.rsqrt(var + _BN_EPS)
            h = jnp.maximum(zh * gamma[None] + beta[None], 0.0)
        return h

    ref = ref_forward(x, params)
    err = float(jnp.max(jnp.abs(out - ref)))
    assert jnp.allclose(out, ref, atol=1e-4, rtol=1e-4), err

    print("KERNEL_OK")
</pallas_src>

<mosaic_0001>
module attributes {stable_mosaic.version = 11 : i64} {
  func.func @_conv_stats_kernel(%arg0: i32, %arg1: i32, %arg2: memref<1x8x16xf32, #tpu.memory_space<vmem>>, %arg3: memref<16x8xf32, #tpu.memory_space<vmem>>, %arg4: memref<1x16x16xf32, #tpu.memory_space<vmem>>, %arg5: memref<16x1xf32, #tpu.memory_space<vmem>>, %arg6: memref<16x1xf32, #tpu.memory_space<vmem>>) attributes {dimension_semantics = [#tpu.dimension_semantics<arbitrary>, #tpu.dimension_semantics<arbitrary>], iteration_bounds = array<i64: 2, 1>, scalar_prefetch = 0 : i64, scratch_operands = 0 : i64, tpu.core_type = #tpu.core_type<tc>, window_params = [{transform_indices = @transform_0, window_bounds = array<i64: 1, 8, 16>}, {pipeline_mode = #tpu.pipeline_mode<synchronous>, transform_indices = @transform_1, window_bounds = array<i64: 16, 8>}, {transform_indices = @transform_2, window_bounds = array<i64: 1, 16, 16>}, {pipeline_mode = #tpu.pipeline_mode<synchronous>, transform_indices = @transform_3, window_bounds = array<i64: 16, 1>}, {pipeline_mode = #tpu.pipeline_mode<synchronous>, transform_indices = @transform_4, window_bounds = array<i64: 16, 1>}]} {
    %c0_i32 = arith.constant 0 : i32
    %0 = arith.cmpi eq, %arg0, %c0_i32 : i32
    %c0_i32_0 = arith.constant 0 : i32
    %1 = arith.cmpi eq, %arg1, %c0_i32_0 : i32
    %2 = arith.andi %0, %1 : i1
    %3 = arith.extui %2 : i1 to i32
    %c0_i32_1 = arith.constant 0 : i32
    %4 = arith.cmpi ne, %3, %c0_i32_1 : i32
    scf.if %4 {
      %cst_19 = arith.constant 0.000000e+00 : f32
      %23 = vector.broadcast %cst_19 : f32 to vector<16x1xf32>
      %c0_20 = arith.constant 0 : index
      %c0_21 = arith.constant 0 : index
      %24 = vector.load %arg5[%c0_20, %c0_21] : memref<16x1xf32, #tpu.memory_space<vmem>>, vector<16x1xf32>
      tpu.vector_store %arg5[%c0_20, %c0_21], %23 {strides = array<i32>} : memref<16x1xf32, #tpu.memory_space<vmem>>, vector<16x1xf32>,
      %cst_22 = arith.constant 0.000000e+00 : f32
      %25 = vector.broadcast %cst_22 : f32 to vector<16x1xf32>
      %c0_23 = arith.constant 0 : index
      %c0_24 = arith.constant 0 : index
      %26 = vector.load %arg6[%c0_23, %c0_24] : memref<16x1xf32, #tpu.memory_space<vmem>>, vector<16x1xf32>
      tpu.vector_store %arg6[%c0_23, %c0_24], %25 {strides = array<i32>} : memref<16x1xf32, #tpu.memory_space<vmem>>, vector<16x1xf32>,
    } else {
    }
    %c0 = arith.constant 0 : index
    %c0_2 = arith.constant 0 : index
    %5 = vector.load %arg3[%c0, %c0_2] : memref<16x8xf32, #tpu.memory_space<vmem>>, vector<16x8xf32>
    %c0_3 = arith.constant 0 : index
    %c0_4 = arith.constant 0 : index
    %c0_5 = arith.constant 0 : index
    %6 = vector.load %arg2[%c0_3, %c0_4, %c0_5] : memref<1x8x16xf32, #tpu.memory_space<vmem>>, vector<1x8x16xf32>
    %7 = vector.shape_cast %6 : vector<1x8x16xf32> to vector<8x16xf32>
    %cst = arith.constant dense<0.000000e+00> : vector<16x16xf32>
    %8 = tpu.matmul %5, %7, %cst {dimension_numbers = #tpu.dot_dimension_numbers<[1], [0], [0], [1], [0, 0, 1, 1], [], []>} : vector<16x8xf32>, vector<8x16xf32>, vector<16x16xf32> -> vector<16x16xf32>
    %c0_6 = arith.constant 0 : index
    %c0_7 = arith.constant 0 : index
    %c0_8 = arith.constant 0 : index
    %9 = vector.load %arg4[%c0_6, %c0_7, %c0_8] : memref<1x16x16xf32, #tpu.memory_space<vmem>>, vector<1x16x16xf32>
    %10 = vector.shape_cast %9 : vector<1x16x16xf32> to vector<16x16xf32>
    %11 = vector.shape_cast %8 : vector<16x16xf32> to vector<1x16x16xf32>
    tpu.vector_store %arg4[%c0_6, %c0_7, %c0_8], %11 {strides = array<i32>} : memref<1x16x16xf32, #tpu.memory_space<vmem>>, vector<1x16x16xf32>,
    %c0_9 = arith.constant 0 : index
    %c0_10 = arith.constant 0 : index
    %12 = vector.load %arg5[%c0_9, %c0_10] : memref<16x1xf32, #tpu.memory_space<vmem>>, vector<16x1xf32>
    %cst_11 = arith.constant dense<0.000000e+00> : vector<16xf32>
    %13 = vector.multi_reduction <add>, %8, %cst_11 [1] : vector<16x16xf32> to vector<16xf32>
    %14 = vector.shape_cast %13 : vector<16xf32> to vector<16x1xf32>
    %15 = arith.addf %12, %14 : vector<16x1xf32>
    %c0_12 = arith.constant 0 : index
    %c0_13 = arith.constant 0 : index
    %16 = vector.load %arg5[%c0_12, %c0_13] : memref<16x1xf32, #tpu.memory_space<vmem>>, vector<16x1xf32>
    tpu.vector_store %arg5[%c0_12, %c0_13], %15 {strides = array<i32>} : memref<16x1xf32, #tpu.memory_space<vmem>>, vector<16x1xf32>,
    %c0_14 = arith.constant 0 : index
    %c0_15 = arith.constant 0 : index
    %17 = vector.load %arg6[%c0_14, %c0_15] : memref<16x1xf32, #tpu.memory_space<vmem>>, vector<16x1xf32>
    %18 = arith.mulf %8, %8 : vector<16x16xf32>
    %cst_16 = arith.constant dense<0.000000e+00> : vector<16xf32>
    %19 = vector.multi_reduction <add>, %18, %cst_16 [1] : vector<16x16xf32> to vector<16xf32>
    %20 = vector.shape_cast %19 : vector<16xf32> to vector<16x1xf32>
    %21 = arith.addf %17, %20 : vector<16x1xf32>
    %c0_17 = arith.constant 0 : index
    %c0_18 = arith.constant 0 : index
    %22 = vector.load %arg6[%c0_17, %c0_18] : memref<16x1xf32, #tpu.memory_space<vmem>>, vector<16x1xf32>
    tpu.vector_store %arg6[%c0_17, %c0_18], %21 {strides = array<i32>} : memref<16x1xf32, #tpu.memory_space<vmem>>, vector<16x1xf32>,
    return
  }
  func.func @transform_0(%arg0: i32, %arg1: i32) -> (i32, i32, i32) {
    %c0_i32 = arith.constant 0 : i32
    %c0_i32_0 = arith.constant 0 : i32
    return %arg0, %c0_i32, %arg1 : i32, i32, i32
  }
  func.func @transform_1(%arg0: i32, %arg1: i32) -> (i32, i32) {
    %c0_i32 = arith.constant 0 : i32
    %c0_i32_0 = arith.constant 0 : i32
    %c0_i32_1 = arith.constant 0 : i32
    return %c0_i32, %c0_i32_0 : i32, i32
  }
  func.func @transform_2(%arg0: i32, %arg1: i32) -> (i32, i32, i32) {
    %c0_i32 = arith.constant 0 : i32
    %c0_i32_0 = arith.constant 0 : i32
    return %arg0, %c0_i32, %arg1 : i32, i32, i32
  }
  func.func @transform_3(%arg0: i32, %arg1: i32) -> (i32, i32) {
    %c0_i32 = arith.constant 0 : i32
    %c0_i32_0 = arith.constant 0 : i32
    %c0_i32_1 = arith.constant 0 : i32
    return %c0_i32, %c0_i32_0 : i32, i32
  }
  func.func @transform_4(%arg0: i32, %arg1: i32) -> (i32, i32) {
    %c0_i32 = arith.constant 0 : i32
    %c0_i32_0 = arith.constant 0 : i32
    %c0_i32_1 = arith.constant 0 : i32
    return %c0_i32, %c0_i32_0 : i32, i32
  }
}

module attributes {stable_mosaic.version = 11 : i64} {
  func.func @_bn_relu_kernel(%arg0: i32, %arg1: i32, %arg2: memref<32x1xf32, #tpu.memory_space<vmem>>, %arg3: memref<32x1xf32, #tpu.memory_space<vmem>>, %arg4: memref<32x1xf32, #tpu.memory_space<vmem>>, %arg5: memref<32x1xf32, #tpu.memory_space<vmem>>, %arg6: memref<1x32x16xf32, #tpu.memory_space<vmem>>, %arg7: memref<1x32x16xf32, #tpu.memory_space<vmem>>) attributes {dimension_semantics = [#tpu.dimension_semantics<parallel>, #tpu.dimension_semantics<parallel>], iteration_bounds = array<i64: 2, 1>, scalar_prefetch = 0 : i64, scratch_operands = 0 : i64, tpu.core_type = #tpu.core_type<tc>, window_params = [{pipeline_mode = #tpu.pipeline_mode<synchronous>, transform_indices = @transform_0, window_bounds = array<i64: 32, 1>}, {pipeline_mode = #tpu.pipeline_mode<synchronous>, transform_indices = @transform_1, window_bounds = array<i64: 32, 1>}, {pipeline_mode = #tpu.pipeline_mode<synchronous>, transform_indices = @transform_2, window_bounds = array<i64: 32, 1>}, {pipeline_mode = #tpu.pipeline_mode<synchronous>, transform_indices = @transform_3, window_bounds = array<i64: 32, 1>}, {transform_indices = @transform_4, window_bounds = array<i64: 1, 32, 16>}, {transform_indices = @transform_5, window_bounds = array<i64: 1, 32, 16>}]} {
    %c0 = arith.constant 0 : index
    %c0_0 = arith.constant 0 : index
    %0 = vector.load %arg2[%c0, %c0_0] : memref<32x1xf32, #tpu.memory_space<vmem>>, vector<32x1xf32>
    %c0_1 = arith.constant 0 : index
    %c0_2 = arith.constant 0 : index
    %1 = vector.load %arg3[%c0_1, %c0_2] : memref<32x1xf32, #tpu.memory_space<vmem>>, vector<32x1xf32>
    %c0_3 = arith.constant 0 : index
    %c0_4 = arith.constant 0 : index
    %2 = vector.load %arg4[%c0_3, %c0_4] : memref<32x1xf32, #tpu.memory_space<vmem>>, vector<32x1xf32>
    %c0_5 = arith.constant 0 : index
    %c0_6 = arith.constant 0 : index
    %3 = vector.load %arg5[%c0_5, %c0_6] : memref<32x1xf32, #tpu.memory_space<vmem>>, vector<32x1xf32>
    %cst = arith.constant 3.125000e-02 : f32
    %4 = vector.broadcast %cst : f32 to vector<32x1xf32>
    %5 = arith.mulf %0, %4 : vector<32x1xf32>
    %cst_7 = arith.constant 3.125000e-02 : f32
    %6 = vector.broadcast %cst_7 : f32 to vector<32x1xf32>
    %7 = arith.mulf %1, %6 : vector<32x1xf32>
    %8 = arith.mulf %5, %5 : vector<32x1xf32>
    %9 = arith.subf %7, %8 : vector<32x1xf32>
    %cst_8 = arith.constant 0.000000e+00 : f32
    %10 = vector.broadcast %cst_8 : f32 to vector<32x1xf32>
    %11 = arith.maximumf %9, %10 : vector<32x1xf32>
    %cst_9 = arith.constant 9.99999974E-6 : f32
    %12 = vector.broadcast %cst_9 : f32 to vector<32x1xf32>
    %13 = arith.addf %11, %12 : vector<32x1xf32>
    %14 = math.rsqrt %13 : vector<32x1xf32>
    %15 = arith.mulf %2, %14 : vector<32x1xf32>
    %16 = arith.mulf %5, %15 : vector<32x1xf32>
    %17 = arith.subf %3, %16 : vector<32x1xf32>
    %c0_10 = arith.constant 0 : index
    %c0_11 = arith.constant 0 : index
    %c0_12 = arith.constant 0 : index
    %18 = vector.load %arg6[%c0_10, %c0_11, %c0_12] : memref<1x32x16xf32, #tpu.memory_space<vmem>>, vector<1x32x16xf32>
    %19 = vector.shape_cast %18 : vector<1x32x16xf32> to vector<32x16xf32>
    %20 = vector.broadcast %15 : vector<32x1xf32> to vector<32x16xf32>
    %21 = arith.mulf %19, %20 : vector<32x16xf32>
    %22 = vector.broadcast %17 : vector<32x1xf32> to vector<32x16xf32>
    %23 = arith.addf %21, %22 : vector<32x16xf32>
    %cst_13 = arith.constant 0.000000e+00 : f32
    %24 = vector.broadcast %cst_13 : f32 to vector<32x16xf32>
    %25 = arith.maximumf %23, %24 : vector<32x16xf32>
    %c0_14 = arith.constant 0 : index
    %c0_15 = arith.constant 0 : index
    %c0_16 = arith.constant 0 : index
    %26 = vector.load %arg7[%c0_14, %c0_15, %c0_16] : memref<1x32x16xf32, #tpu.memory_space<vmem>>, vector<1x32x16xf32>
    %27 = vector.shape_cast %26 : vector<1x32x16xf32> to vector<32x16xf32>
    %28 = vector.shape_cast %25 : vector<32x16xf32> to vector<1x32x16xf32>
    tpu.vector_store %arg7[%c0_14, %c0_15, %c0_16], %28 {strides = array<i32>} : memref<1x32x16xf32, #tpu.memory_space<vmem>>, vector<1x32x16xf32>,
    return
  }
  func.func @transform_0(%arg0: i32, %arg1: i32) -> (i32, i32) {
    %c0_i32 = arith.constant 0 : i32
    %c0_i32_0 = arith.constant 0 : i32
    %c0_i32_1 = arith.constant 0 : i32
    return %c0_i32, %c0_i32_0 : i32, i32
  }
  func.func @transform_1(%arg0: i32, %arg1: i32) -> (i32, i32) {
    %c0_i32 = arith.constant 0 : i32
    %c0_i32_0 = arith.constant 0 : i32
    %c0_i32_1 = arith.constant 0 : i32
    return %c0_i32, %c0_i32_0 : i32, i32
  }
  func.func @transform_2(%arg0: i32, %arg1: i32) -> (i32, i32) {
    %c0_i32 = arith.constant 0 : i32
    %c0_i32_0 = arith.constant 0 : i32
    %c0_i32_1 = arith.constant 0 : i32
    return %c0_i32, %c0_i32_0 : i32, i32
  }
  func.func @transform_3(%arg0: i32, %arg1: i32) -> (i32, i32) {
    %c0_i32 = arith.constant 0 : i32
    %c0_i32_0 = arith.constant 0 : i32
    %c0_i32_1 = arith.constant 0 : i32
    return %c0_i32, %c0_i32_0 : i32, i32
  }
  func.func @transform_4(%arg0: i32, %arg1: i32) -> (i32, i32, i32) {
    %c0_i32 = arith.constant 0 : i32
    %c0_i32_0 = arith.constant 0 : i32
    return %arg0, %c0_i32, %arg1 : i32, i32, i32
  }
  func.func @transform_5(%arg0: i32, %arg1: i32) -> (i32, i32, i32) {
    %c0_i32 = arith.constant 0 : i32
    %c0_i32_0 = arith.constant 0 : i32
    return %arg0, %c0_i32, %arg1 : i32, i32, i32
  }
}

module attributes {stable_mosaic.version = 11 : i64} {
  func.func @_bn_relu_conv_stats_kernel(%arg0: i32, %arg1: i32, %arg2: memref<16x1xf32, #tpu.memory_space<vmem>>, %arg3: memref<16x1xf32, #tpu.memory_space<vmem>>, %arg4: memref<16x1xf32, #tpu.memory_space<vmem>>, %arg5: memref<16x1xf32, #tpu.memory_space<vmem>>, %arg6: memref<1x16x16xf32, #tpu.memory_space<vmem>>, %arg7: memref<32x16xf32, #tpu.memory_space<vmem>>, %arg8: memref<1x32x16xf32, #tpu.memory_space<vmem>>, %arg9: memref<32x1xf32, #tpu.memory_space<vmem>>, %arg10: memref<32x1xf32, #tpu.memory_space<vmem>>) attributes {dimension_semantics = [#tpu.dimension_semantics<arbitrary>, #tpu.dimension_semantics<arbitrary>], iteration_bounds = array<i64: 2, 1>, scalar_prefetch = 0 : i64, scratch_operands = 0 : i64, tpu.core_type = #tpu.core_type<tc>, window_params = [{pipeline_mode = #tpu.pipeline_mode<synchronous>, transform_indices = @transform_0, window_bounds = array<i64: 16, 1>}, {pipeline_mode = #tpu.pipeline_mode<synchronous>, transform_indices = @transform_1, window_bounds = array<i64: 16, 1>}, {pipeline_mode = #tpu.pipeline_mode<synchronous>, transform_indices = @transform_2, window_bounds = array<i64: 16, 1>}, {pipeline_mode = #tpu.pipeline_mode<synchronous>, transform_indices = @transform_3, window_bounds = array<i64: 16, 1>}, {transform_indices = @transform_4, window_bounds = array<i64: 1, 16, 16>}, {pipeline_mode = #tpu.pipeline_mode<synchronous>, transform_indices = @transform_5, window_bounds = array<i64: 32, 16>}, {transform_indices = @transform_6, window_bounds = array<i64: 1, 32, 16>}, {pipeline_mode = #tpu.pipeline_mode<synchronous>, transform_indices = @transform_7, window_bounds = array<i64: 32, 1>}, {pipeline_mode = #tpu.pipeline_mode<synchronous>, transform_indices = @transform_8, window_bounds = array<i64: 32, 1>}]} {
    %c0_i32 = arith.constant 0 : i32
    %0 = arith.cmpi eq, %arg0, %c0_i32 : i32
    %c0_i32_0 = arith.constant 0 : i32
    %1 = arith.cmpi eq, %arg1, %c0_i32_0 : i32
    %2 = arith.andi %0, %1 : i1
    %3 = arith.extui %2 : i1 to i32
    %c0_i32_1 = arith.constant 0 : i32
    %4 = arith.cmpi ne, %3, %c0_i32_1 : i32
    scf.if %4 {
      %cst_32 = arith.constant 0.000000e+00 : f32
      %47 = vector.broadcast %cst_32 : f32 to vector<32x1xf32>
      %c0_33 = arith.constant 0 : index
      %c0_34 = arith.constant 0 : index
      %48 = vector.load %arg9[%c0_33, %c0_34] : memref<32x1xf32, #tpu.memory_space<vmem>>, vector<32x1xf32>
      tpu.vector_store %arg9[%c0_33, %c0_34], %47 {strides = array<i32>} : memref<32x1xf32, #tpu.memory_space<vmem>>, vector<32x1xf32>,
      %cst_35 = arith.constant 0.000000e+00 : f32
      %49 = vector.broadcast %cst_35 : f32 to vector<32x1xf32>
      %c0_36 = arith.constant 0 : index
      %c0_37 = arith.constant 0 : index
      %50 = vector.load %arg10[%c0_36, %c0_37] : memref<32x1xf32, #tpu.memory_space<vmem>>, vector<32x1xf32>
      tpu.vector_store %arg10[%c0_36, %c0_37], %49 {strides = array<i32>} : memref<32x1xf32, #tpu.memory_space<vmem>>, vector<32x1xf32>,
    } else {
    }
    %c0 = arith.constant 0 : index
    %c0_2 = arith.constant 0 : index
    %5 = vector.load %arg2[%c0, %c0_2] : memref<16x1xf32, #tpu.memory_space<vmem>>, vector<16x1xf32>
    %c0_3 = arith.constant 0 : index
    %c0_4 = arith.constant 0 : index
    %6 = vector.load %arg3[%c0_3, %c0_4] : memref<16x1xf32, #tpu.memory_space<vmem>>, vector<16x1xf32>
    %c0_5 = arith.constant 0 : index
    %c0_6 = arith.constant 0 : index
    %7 = vector.load %arg4[%c0_5, %c0_6] : memref<16x1xf32, #tpu.memory_space<vmem>>, vector<16x1xf32>
    %c0_7 = arith.constant 0 : index
    %c0_8 = arith.constant 0 : index
    %8 = vector.load %arg5[%c0_7, %c0_8] : memref<16x1xf32, #tpu.memory_space<vmem>>, vector<16x1xf32>
    %cst = arith.constant 3.125000e-02 : f32
    %9 = vector.broadcast %cst : f32 to vector<16x1xf32>
    %10 = arith.mulf %5, %9 : vector<16x1xf32>
    %cst_9 = arith.constant 3.125000e-02 : f32
    %11 = vector.broadcast %cst_9 : f32 to vector<16x1xf32>
    %12 = arith.mulf %6, %11 : vector<16x1xf32>
    %13 = arith.mulf %10, %10 : vector<16x1xf32>
    %14 = arith.subf %12, %13 : vector<16x1xf32>
    %cst_10 = arith.constant 0.000000e+00 : f32
    %15 = vector.broadcast %cst_10 : f32 to vector<16x1xf32>
    %16 = arith.maximumf %14, %15 : vector<16x1xf32>
    %cst_11 = arith.constant 9.99999974E-6 : f32
    %17 = vector.broadcast %cst_11 : f32 to vector<16x1xf32>
    %18 = arith.addf %16, %17 : vector<16x1xf32>
    %19 = math.rsqrt %18 : vector<16x1xf32>
    %20 = arith.mulf %7, %19 : vector<16x1xf32>
    %21 = arith.mulf %10, %20 : vector<16x1xf32>
    %22 = arith.subf %8, %21 : vector<16x1xf32>
    %c0_12 = arith.constant 0 : index
    %c0_13 = arith.constant 0 : index
    %c0_14 = arith.constant 0 : index
    %23 = vector.load %arg6[%c0_12, %c0_13, %c0_14] : memref<1x16x16xf32, #tpu.memory_space<vmem>>, vector<1x16x16xf32>
    %24 = vector.shape_cast %23 : vector<1x16x16xf32> to vector<16x16xf32>
    %25 = vector.broadcast %20 : vector<16x1xf32> to vector<16x16xf32>
    %26 = arith.mulf %24, %25 : vector<16x16xf32>
    %27 = vector.broadcast %22 : vector<16x1xf32> to vector<16x16xf32>
    %28 = arith.addf %26, %27 : vector<16x16xf32>
    %cst_15 = arith.constant 0.000000e+00 : f32
    %29 = vector.broadcast %cst_15 : f32 to vector<16x16xf32>
    %30 = arith.maximumf %28, %29 : vector<16x16xf32>
    %c0_16 = arith.constant 0 : index
    %c0_17 = arith.constant 0 : index
    %31 = vector.load %arg7[%c0_16, %c0_17] : memref<32x16xf32, #tpu.memory_space<vmem>>, vector<32x16xf32>
    %cst_18 = arith.constant dense<0.000000e+00> : vector<32x16xf32>
    %32 = tpu.matmul %31, %30, %cst_18 {dimension_numbers = #tpu.dot_dimension_numbers<[1], [0], [0], [1], [0, 0, 1, 1], [], []>} : vector<32x16xf32>, vector<16x16xf32>, vector<32x16xf32> -> vector<32x16xf32>
    %c0_19 = arith.constant 0 : index
    %c0_20 = arith.constant 0 : index
    %c0_21 = arith.constant 0 : index
    %33 = vector.load %arg8[%c0_19, %c0_20, %c0_21] : memref<1x32x16xf32, #tpu.memory_space<vmem>>, vector<1x32x16xf32>
    %34 = vector.shape_cast %33 : vector<1x32x16xf32> to vector<32x16xf32>
    %35 = vector.shape_cast %32 : vector<32x16xf32> to vector<1x32x16xf32>
    tpu.vector_store %arg8[%c0_19, %c0_20, %c0_21], %35 {strides = array<i32>} : memref<1x32x16xf32, #tpu.memory_space<vmem>>, vector<1x32x16xf32>,
    %c0_22 = arith.constant 0 : index
    %c0_23 = arith.constant 0 : index
    %36 = vector.load %arg9[%c0_22, %c0_23] : memref<32x1xf32, #tpu.memory_space<vmem>>, vector<32x1xf32>
    %cst_24 = arith.constant dense<0.000000e+00> : vector<32xf32>
    %37 = vector.multi_reduction <add>, %32, %cst_24 [1] : vector<32x16xf32> to vector<32xf32>
    %38 = vector.shape_cast %37 : vector<32xf32> to vector<32x1xf32>
    %39 = arith.addf %36, %38 : vector<32x1xf32>
    %c0_25 = arith.constant 0 : index
    %c0_26 = arith.constant 0 : index
    %40 = vector.load %arg9[%c0_25, %c0_26] : memref<32x1xf32, #tpu.memory_space<vmem>>, vector<32x1xf32>
    tpu.vector_store %arg9[%c0_25, %c0_26], %39 {strides = array<i32>} : memref<32x1xf32, #tpu.memory_space<vmem>>, vector<32x1xf32>,
    %c0_27 = arith.constant 0 : index
    %c0_28 = arith.constant 0 : index
    %41 = vector.load %arg10[%c0_27, %c0_28] : memref<32x1xf32, #tpu.memory_space<vmem>>, vector<32x1xf32>
    %42 = arith.mulf %32, %32 : vector<32x16xf32>
    %cst_29 = arith.constant dense<0.000000e+00> : vector<32xf32>
    %43 = vector.multi_reduction <add>, %42, %cst_29 [1] : vector<32x16xf32> to vector<32xf32>
    %44 = vector.shape_cast %43 : vector<32xf32> to vector<32x1xf32>
    %45 = arith.addf %41, %44 : vector<32x1xf32>
    %c0_30 = arith.constant 0 : index
    %c0_31 = arith.constant 0 : index
    %46 = vector.load %arg10[%c0_30, %c0_31] : memref<32x1xf32, #tpu.memory_space<vmem>>, vector<32x1xf32>
    tpu.vector_store %arg10[%c0_30, %c0_31], %45 {strides = array<i32>} : memref<32x1xf32, #tpu.memory_space<vmem>>, vector<32x1xf32>,
    return
  }
  func.func @transform_0(%arg0: i32, %arg1: i32) -> (i32, i32) {
    %c0_i32 = arith.constant 0 : i32
    %c0_i32_0 = arith.constant 0 : i32
    %c0_i32_1 = arith.constant 0 : i32
    return %c0_i32, %c0_i32_0 : i32, i32
  }
  func.func @transform_1(%arg0: i32, %arg1: i32) -> (i32, i32) {
    %c0_i32 = arith.constant 0 : i32
    %c0_i32_0 = arith.constant 0 : i32
    %c0_i32_1 = arith.constant 0 : i32
    return %c0_i32, %c0_i32_0 : i32, i32
  }
  func.func @transform_2(%arg0: i32, %arg1: i32) -> (i32, i32) {
    %c0_i32 = arith.constant 0 : i32
    %c0_i32_0 = arith.constant 0 : i32
    %c0_i32_1 = arith.constant 0 : i32
    return %c0_i32, %c0_i32_0 : i32, i32
  }
  func.func @transform_3(%arg0: i32, %arg1: i32) -> (i32, i32) {
    %c0_i32 = arith.constant 0 : i32
    %c0_i32_0 = arith.constant 0 : i32
    %c0_i32_1 = arith.constant 0 : i32
    return %c0_i32, %c0_i32_0 : i32, i32
  }
  func.func @transform_4(%arg0: i32, %arg1: i32) -> (i32, i32, i32) {
    %c0_i32 = arith.constant 0 : i32
    %c0_i32_0 = arith.constant 0 : i32
    return %arg0, %c0_i32, %arg1 : i32, i32, i32
  }
  func.func @transform_5(%arg0: i32, %arg1: i32) -> (i32, i32) {
    %c0_i32 = arith.constant 0 : i32
    %c0_i32_0 = arith.constant 0 : i32
    %c0_i32_1 = arith.constant 0 : i32
    return %c0_i32, %c0_i32_0 : i32, i32
  }
  func.func @transform_6(%arg0: i32, %arg1: i32) -> (i32, i32, i32) {
    %c0_i32 = arith.constant 0 : i32
    %c0_i32_0 = arith.constant 0 : i32
    return %arg0, %c0_i32, %arg1 : i32, i32, i32
  }
  func.func @transform_7(%arg0: i32, %arg1: i32) -> (i32, i32) {
    %c0_i32 = arith.constant 0 : i32
    %c0_i32_0 = arith.constant 0 : i32
    %c0_i32_1 = arith.constant 0 : i32
    return %c0_i32, %c0_i32_0 : i32, i32
  }
  func.func @transform_8(%arg0: i32, %arg1: i32) -> (i32, i32) {
    %c0_i32 = arith.constant 0 : i32
    %c0_i32_0 = arith.constant 0 : i32
    %c0_i32_1 = arith.constant 0 : i32
    return %c0_i32, %c0_i32_0 : i32, i32
  }
}

</mosaic_0001>

<llo_original>
// kernel: mlp_forward.3
$region0: #{mlp_forward.3}
  #allocation0 [shape = 'u32[]', space=smem, size = 0x4, offset = 0x4, fixed_abs, tag = 'smem constant byte address 0x4 - core index']
  #allocation1 [shape = 'u32[144,128]{1,0:T(1,128)}', space=vmem, size = 0x12000, scoped, tag = 'internal scratch']
  %s0 = inlined_call_operand.vmem [shape: f32[2,8,16], index: 0, kind: input, shape index: {}]
  %s1 = inlined_call_operand.vmem [shape: f32[16,8], index: 1, kind: input, shape index: {}]
  %s2 = inlined_call_operand.vmem [shape: f32[2,16,16], index: 2, kind: output, shape index: {0}]
  %s3 = inlined_call_operand.vmem [shape: f32[16,1], index: 3, kind: output, shape index: {1}]
  %s4 = inlined_call_operand.vmem [shape: f32[16,1], index: 4, kind: output, shape index: {2}]
  %5 = xla_tuple %s2, %s3, %s4
  %s6 = sld [smem:[#allocation0]]
  $region61: #{mlp_forward.3} parent=0
    _
  %s8 = ssub.s32 1, %s6
  %s9 = scalar_select 0, %s8, %s6
  loop: start=0, step=1, limit=4
  $region2: #{mlp_forward.3} parent=0 // loop_pre_header
    _
  $region3: #{mlp_forward.3} parent=0 // loop_header
    %s11 = sphi 0, %s15
    %p12 = scmp.ge.s32.totalorder %s11, 4
    %s18 = sphi 0, %s30
    %s19 = sphi 0, %s26
    %s20 = sphi 0, %s18
    %s21 = sphi 0, %s19
    %s22 = sphi 0, %s20
    %s23 = sphi 0, %s21
    %s35 = sphi 0, %s37
    %s38 = sphi 0, %s35
    %s39 = sphi 0, %s38
    %s55 = sphi 0, %s39
    %s59 = sphi 0, %s59
    %s61 = sphi 0, %s59
    %s62 = sphi 0, %s61
    %s76 = sphi 0, %s62
    %s84 = sphi 0, %s86
    %s87 = sphi 0, %s84
    %s88 = sphi 0, %s87
    %s104 = sphi 0, %s88
    %s108 = sphi 0, %s108
    %s110 = sphi 0, %s108
    %s111 = sphi 0, %s110
    %s125 = sphi 0, %s111
    %s129 = sphi 0, %s129
    %s131 = sphi 0, %s129
    %s132 = sphi 0, %s131
    %s146 = sphi 0, %s132
  $region4: #{mlp_forward.3} parent=0 // loop_header_branch
    %14 = sbr.rel (%p12) target = $region8
  $region5: #{mlp_forward.3} parent=0 // loop_body
    %s16 = ssub.s32 %s11, 1
    %s17 = ssub.s32 %s11, 2
    %s24 = sadd.s32 1, %s19
    %p25 = scmp.ge.s32.totalorder %s24, 1
    %s26 = scalar_select %p25, 0, %s24
    %s27 = sadd.s32 1, %s18
    %s28 = scalar_select %p25, %s27, %s18
    %p29 = scmp.ge.s32.totalorder %s28, 2
    %s30 = scalar_select %p29, 0, %s28
    %s31 = ssub.s32 %s18, %s30
    %s32 = ssub.s32 %s19, %s26
    %s33 = sor.u32 %s31, %s32
    %p34 = scmp.eq.s32.totalorder %s33, 0
    %s36 = sadd.s32 %s35, 1
    %s37 = scalar_select %p34, %s35, %s36
    %p40 = pneg %p34
    %p41 = scmp.eq.s32.totalorder %s11, 1
    %p42 = por %p40, %p41
    %p43 = scmp.ne.s32.totalorder %s35, %s38
    %p44 = scmp.eq.s32.totalorder %s11, 0
    %p45 = por %p43, %p44
    %p46 = scmp.ne.s32.totalorder %s35, %s38
    %p47 = scmp.eq.s32.totalorder %s16, 1
    %p48 = por %p46, %p47
    %p49 = scmp.ne.s32.totalorder %s38, %s39
    %p50 = scmp.eq.s32.totalorder %s16, 0
    %p51 = por %p49, %p50
    %p52 = scmp.ne.s32.totalorder %s38, %s39
    %p53 = scmp.eq.s32.totalorder %s17, 1
    %p54 = por %p52, %p53
    %p56 = scmp.ne.s32.totalorder %s39, %s55
    %p57 = scmp.eq.s32.totalorder %s17, 0
    %p58 = por %p56, %p57
    %s60 = sadd.s32 %s59, 1
    %p63 = scmp.eq.s32.totalorder %s11, 1
    %p64 = scmp.ne.s32.totalorder %s59, %s61
    %p65 = scmp.eq.s32.totalorder %s11, 0
    %p66 = por %p64, %p65
    %p67 = scmp.ne.s32.totalorder %s59, %s61
    %p68 = scmp.eq.s32.totalorder %s16, 1
    %p69 = por %p67, %p68
    %p70 = scmp.ne.s32.totalorder %s61, %s62
    %p71 = scmp.eq.s32.totalorder %s16, 0
    %p72 = por %p70, %p71
    %p73 = scmp.ne.s32.totalorder %s61, %s62
    %p74 = scmp.eq.s32.totalorder %s17, 1
    %p75 = por %p73, %p74
    %p77 = scmp.ne.s32.totalorder %s62, %s76
    %p78 = scmp.eq.s32.totalorder %s17, 0
    %p79 = por %p77, %p78
    %s80 = ssub.s32 %s18, %s30
    %s81 = ssub.s32 %s19, %s26
    %s82 = sor.u32 %s80, %s81
    %p83 = scmp.eq.s32.totalorder %s82, 0
    %s85 = sadd.s32 %s84, 1
    %s86 = scalar_select %p83, %s84, %s85
    %p89 = pneg %p83
    %p90 = scmp.eq.s32.totalorder %s11, 1
    %p91 = por %p89, %p90
    %p92 = scmp.ne.s32.totalorder %s84, %s87
    %p93 = scmp.eq.s32.totalorder %s11, 0
    %p94 = por %p92, %p93
    %p95 = scmp.ne.s32.totalorder %s84, %s87
    %p96 = scmp.eq.s32.totalorder %s16, 1
    %p97 = por %p95, %p96
    %p98 = scmp.ne.s32.totalorder %s87, %s88
    %p99 = scmp.eq.s32.totalorder %s16, 0
    %p100 = por %p98, %p99
    %p101 = scmp.ne.s32.totalorder %s87, %s88
    %p102 = scmp.eq.s32.totalorder %s17, 1
    %p103 = por %p101, %p102
    %p105 = scmp.ne.s32.totalorder %s88, %s104
    %p106 = scmp.eq.s32.totalorder %s17, 0
    %p107 = por %p105, %p106
    %s109 = sadd.s32 %s108, 1
    %p112 = scmp.eq.s32.totalorder %s11, 1
    %p113 = scmp.ne.s32.totalorder %s108, %s110
    %p114 = scmp.eq.s32.totalorder %s11, 0
    %p115 = por %p113, %p114
    %p116 = scmp.ne.s32.totalorder %s108, %s110
    %p117 = scmp.eq.s32.totalorder %s16, 1
    %p118 = por %p116, %p117
    %p119 = scmp.ne.s32.totalorder %s110, %s111
    %p120 = scmp.eq.s32.totalorder %s16, 0
    %p121 = por %p119, %p120
    %p122 = scmp.ne.s32.totalorder %s110, %s111
    %p123 = scmp.eq.s32.totalorder %s17, 1
    %p124 = por %p122, %p123
    %p126 = scmp.ne.s32.totalorder %s111, %s125
    %p127 = scmp.eq.s32.totalorder %s17, 0
    %p128 = por %p126, %p127
    %s130 = sadd.s32 %s129, 1
    %p133 = scmp.eq.s32.totalorder %s11, 1
    %p134 = scmp.ne.s32.totalorder %s129, %s131
    %p135 = scmp.eq.s32.totalorder %s11, 0
    %p136 = por %p134, %p135
    %p137 = scmp.ne.s32.totalorder %s129, %s131
    %p138 = scmp.eq.s32.totalorder %s16, 1
    %p139 = por %p137, %p138
    %p140 = scmp.ne.s32.totalorder %s131, %s132
    %p141 = scmp.eq.s32.totalorder %s16, 0
    %p142 = por %p140, %p141
    %p143 = scmp.ne.s32.totalorder %s131, %s132
    %p144 = scmp.eq.s32.totalorder %s17, 1
    %p145 = por %p143, %p144
    %p147 = scmp.ne.s32.totalorder %s132, %s146
    %p148 = scmp.eq.s32.totalorder %s17, 0
    %p149 = por %p147, %p148
    %p150 = scmp.le.s32.totalorder 1, %s11
    %p151 = scmp.lt.s32.totalorder %s11, 3
    %p152 = pnand %p150, %p151
    %p153 = pneg %p152
    // Predicated region
    $region9: #{mlp_forward.3} parent=5 // pred_check
      _
    $region10: #{mlp_forward.3} parent=5 // pred_check_branch
      %155 = sbr.rel (%p152) target = $region12
    $region11: #{mlp_forward.3} parent=5 // pred_region
      %s156 = ssub.s32 %s11, 1
      // Predicated region
      $region13: #{mlp_forward.3} parent=11 // pred_check
        %p157 = pneg %p72
      $region14: #{mlp_forward.3} parent=11 // pred_check_branch
        %159 = sbr.rel (%p157) target = $region16
      $region15: #{mlp_forward.3} parent=11 // pred_region
        _
      $region16: #{mlp_forward.3} parent=11 // pred_fallthru
        _
    $region12: #{mlp_forward.3} parent=5 // pred_fallthru
      _
    %p160 = scmp.lt.s32.totalorder %s11, 2
    // Predicated region
    $region17: #{mlp_forward.3} parent=5 // pred_check
      %p161 = pneg %p160
    $region18: #{mlp_forward.3} parent=5 // pred_check_branch
      %163 = sbr.rel (%p161) target = $region20
    $region19: #{mlp_forward.3} parent=5 // pred_region
      // Predicated region
      $region21: #{mlp_forward.3} parent=19 // pred_check
        %p164 = pneg %p45
      $region22: #{mlp_forward.3} parent=19 // pred_check_branch
        %166 = sbr.rel (%p164) target = $region24
      $region23: #{mlp_forward.3} parent=19 // pred_region
        %p167 = scmp.lt.s32.totalorder %s18, 1
        %s168 = scalar_select %p167, %s18, 1
        %p169 = scmp.lt.s32.totalorder %s19, 0
        %s170 = scalar_select %p169, %s19, 0
        %s171 = sadd.s32 %s170, %s168
        %s172 = smul.addr %s171, 8
        %s173 = scalar_lea.vmem %s0, %s172
      $region24: #{mlp_forward.3} parent=19 // pred_fallthru
        _
    $region20: #{mlp_forward.3} parent=5 // pred_fallthru
      _
    %p174 = scmp.le.s32.totalorder 1, %s11
    %p175 = scmp.lt.s32.totalorder %s11, 3
    %p176 = pnand %p174, %p175
    %p177 = pneg %p176
    // Predicated region
    $region25: #{mlp_forward.3} parent=5 // pred_check
      _
    $region26: #{mlp_forward.3} parent=5 // pred_check_branch
      %179 = sbr.rel (%p176) target = $region28
    $region27: #{mlp_forward.3} parent=5 // pred_region
      %s180 = ssub.s32 %s11, 1
      %p181 = scmp.lt.s32.totalorder %s20, 1
      %s182 = scalar_select %p181, %s20, 1
      %p183 = scmp.lt.s32.totalorder %s21, 0
      %s184 = scalar_select %p183, %s21, 0
      %s185 = sadd.s32 %s184, %s182
      %s186 = smul.addr %s185, 8
      %s187 = scalar_lea.vmem %s0, %s186
      %p188 = pneg %p51
      %p189 = pneg %p48
      %p190 = pneg %p72
      %p191 = pneg %p69
      %p192 = pneg %p100
      %p193 = pneg %p97
      %p194 = scmp.lt.s32.totalorder %s20, 1
      %s195 = scalar_select %p194, %s20, 1
      %p196 = scmp.lt.s32.totalorder %s21, 0
      %s197 = scalar_select %p196, %s21, 0
      %s198 = smul.addr %s195, 2
      %s199 = sadd.s32 %s197, %s198
      %s200 = smul.addr %s199, 8
      %s201 = scalar_lea.vmem %s2, %s200
      %p202 = pneg %p121
      %p203 = pneg %p118
      %p204 = pneg %p142
      %p205 = pneg %p139
      %p206 = scmp.lt.s32.totalorder %s20, 1
      %s207 = scalar_select %p206, %s20, 1
      %p208 = scmp.lt.s32.totalorder %s21, 0
      %s209 = scalar_select %p208, %s21, 0
      %s210 = sadd.s32 %s209, %s207
      %s211 = smul.addr %s210, 8
      %s212 = scalar_lea.vmem %s0, %s211
      %p213 = scmp.lt.s32.totalorder %s20, 1
      %s214 = scalar_select %p213, %s20, 1
      %p215 = scmp.lt.s32.totalorder %s21, 0
      %s216 = scalar_select %p215, %s21, 0
      %s217 = smul.addr %s214, 2
      %s218 = sadd.s32 %s216, %s217
      %s219 = smul.addr %s218, 8
      %s220 = scalar_lea.vmem %s2, %s219
      %p221 = scmp.eq.s32.totalorder %s20, 0
      %p222 = scmp.eq.s32.totalorder %s21, 0
      %p223 = pnand %p221, %p222
      %p224 = pneg %p223
      // Predicated region
      $region29: #{mlp_forward.3} parent=27 // pred_check
        _
      $region30: #{mlp_forward.3} parent=27 // pred_check_branch
        %226 = sbr.rel (%p223) target = $region32
      $region31: #{mlp_forward.3} parent=27 // pred_region
        %vm227 = vcmask 7168
        %228 = vst.msk [vmem:[%s3] sm:$0xff] %vm227, 0.0
        %229 = vst.msk [vmem:[%s3 + $0x8] sm:$0xff] %vm227, 0.0
        %230 = vst.msk [vmem:[%s4] sm:$0xff] %vm227, 0.0
        %231 = vst.msk [vmem:[%s4 + $0x8] sm:$0xff] %vm227, 0.0
      $region32: #{mlp_forward.3} parent=27 // pred_fallthru
        _
      %v232 = vld [vmem:[%s1] sm:$0xff]
      %v233 = vld [vmem:[%s1 + $0x8] sm:$0xff]
      %v234 = vld [vmem:[%s212] sm:$0xff]
      %vm235 = vcmask 64512
      %v237 = vsel %vm235, %v232, 0
      %v240 = vsel %vm235, %v233, 0
      %242 = vmatprep.subr.mxu0 0.0
      %243 = vmatpush1.msra.mxu0 %v234
      %244 = vmatprep.subr.mxu0 0.0
      %245 = vmatpush1.msra.mxu0 0.0
      %246 = vmatprep.subr.mxu0 0.0
      %247 = vmatpush1.msra.mxu0 0.0
      %248 = vmatprep.subr.mxu0 0.0
      %249 = vmatpush1.msra.mxu0 0.0
      %250 = vmatprep.subr.mxu0 0.0
      %251 = vmatpush1.msra.mxu0 0.0
      %252 = vmatprep.subr.mxu0 0.0
      %253 = vmatpush1.msra.mxu0 0.0
      %254 = vmatprep.subr.mxu0 0.0
      %255 = vmatpush1.msra.mxu0 0.0
      %256 = vmatprep.subr.mxu0 0.0
      %257 = vmatpush1.msra.mxu0 0.0
      %258 = vmatprep.subr.mxu0 0.0
      %259 = vmatpush1.msra.mxu0 0.0
      %260 = vmatprep.subr.mxu0 0.0
      %261 = vmatpush1.msra.mxu0 0.0
      %262 = vmatprep.subr.mxu0 0.0
      %263 = vmatpush1.msra.mxu0 0.0
      %264 = vmatprep.subr.mxu0 0.0
      %265 = vmatpush1.msra.mxu0 0.0
      %266 = vmatprep.subr.mxu0 0.0
      %267 = vmatpush1.msra.mxu0 0.0
      %268 = vmatprep.subr.mxu0 0.0
      %269 = vmatpush1.msra.mxu0 0.0
      %270 = vmatprep.subr.mxu0 0.0
      %271 = vmatpush1.msra.mxu0 0.0
      %272 = vmatprep.subr.mxu0 0.0
      %273 = vmatpush1.msra.mxu0 0.0
      %274 = vmatprep.subr.mxu0 0.0
      %275 = vmatpush1.msra.mxu0 0.0
      %276 = vmatprep.subr.mxu0 0.0
      %277 = vmatpush1.msra.mxu0 0.0
      %278 = vmatprep.subr.mxu0 0.0
      %279 = vmatpush1.msra.mxu0 0.0
      %280 = vmatprep.subr.mxu0 0.0
      %281 = vmatpush1.msra.mxu0 0.0
      %282 = vmatprep.subr.mxu0 0.0
      %283 = vmatpush1.msra.mxu0 0.0
      %284 = vmatprep.subr.mxu0 0.0
      %285 = vmatpush1.msra.mxu0 0.0
      %286 = vmatprep.subr.mxu0 0.0
      %287 = vmatpush1.msra.mxu0 0.0
      %288 = vmatprep.subr.mxu0 0.0
      %289 = vmatpush1.msra.mxu0 0.0
      %290 = vmatprep.subr.mxu0 0.0
      %291 = vmatpush1.msra.mxu0 0.0
      %292 = vmatprep.subr.mxu0 0.0
      %293 = vmatpush1.msra.mxu0 0.0
      %294 = vmatprep.subr.mxu0 0.0
      %295 = vmatpush1.msra.mxu0 0.0
      %296 = vmatprep.subr.mxu0 0.0
      %297 = vmatpush1.msra.mxu0 0.0
      %298 = vmatprep.subr.mxu0 0.0
      %299 = vmatpush1.msra.mxu0 0.0
      %300 = vmatprep.subr.mxu0 0.0
      %301 = vmatpush1.msra.mxu0 0.0
      %302 = vmatprep.subr.mxu0 0.0
      %303 = vmatpush1.msra.mxu0 0.0
      %304 = vmatprep.subr.mxu0 0.0
      %305 = vmatpush1.msra.mxu0 0.0
      %306 = vmatprep.mubr.f32.mxu0 0.0
      %307 = vmatmul.mubr.f32.gmra.mrb[0].mxu0 %v237
      %v308 = vpop.f32.mrb[0].mxu0
      %v309 = vadd.f32 0.0, %v308
      %v310 = vpop.f32.mrb[0].mxu0
      %311 = vmatprep.mubr.f32.mxu0 0.0
      %312 = vmatmul.mubr.f32.gmra.mrb[0].mxu0 %v240
      %v313 = vpop.f32.mrb[0].mxu0
      %v314 = vadd.f32 0.0, %v313
      %v315 = vpop.f32.mrb[0].mxu0
      %316 = vdwg.mxu0
      %vm317 = vcmask 130048
      %318 = vst.msk [vmem:[%s220] sm:$0xff] %vm317, %v309
      %319 = vst.msk [vmem:[%s220 + $0x8] sm:$0xff] %vm317, %v314
      %v320 = vld [vmem:[%s3] sm:$0xff]
      %v321 = vld [vmem:[%s3 + $0x8] sm:$0xff]
      %v322 = vsel %vm317, %v309, 0.0
      %323 = vadd.xlane.f32.xlu0 %v322
      %v324 = vpop.xlane.xlu0 %323
      %v325 = vsel %vm317, %v314, 0.0
      %326 = vadd.xlane.f32.xlu0 %v325
      %v327 = vpop.xlane.xlu0 %326
      %v328 = vadd.f32 %v320, %v324
      %v329 = vadd.f32 %v321, %v327
      %vm330 = vcmask 7168
      %331 = vst.msk [vmem:[%s3] sm:$0xff] %vm330, %v328
      %332 = vst.msk [vmem:[%s3 + $0x8] sm:$0xff] %vm330, %v329
      %v333 = vld [vmem:[%s4] sm:$0xff]
      %v334 = vld [vmem:[%s4 + $0x8] sm:$0xff]
      %v335 = vmul.f32 %v309, %v309
      %v336 = vmul.f32 %v314, %v314
      %v337 = vsel %vm317, %v335, 0.0
      %338 = vadd.xlane.f32.xlu0 %v337
      %v339 = vpop.xlane.xlu0 %338
      %v340 = vsel %vm317, %v336, 0.0
      %341 = vadd.xlane.f32.xlu0 %v340
      %v342 = vpop.xlane.xlu0 %341
      %v343 = vadd.f32 %v333, %v339
      %v344 = vadd.f32 %v334, %v342
      %345 = vst.msk [vmem:[%s4] sm:$0xff] %vm330, %v343
      %346 = vst.msk [vmem:[%s4 + $0x8] sm:$0xff] %vm330, %v344
      %p347 = scmp.lt.s32.totalorder %s20, 1
      %s348 = scalar_select %p347, %s20, 1
      %p349 = scmp.lt.s32.totalorder %s21, 0
      %s350 = scalar_select %p349, %s21, 0
      %s351 = smul.addr %s348, 2
      %s352 = sadd.s32 %s350, %s351
      %s353 = smul.addr %s352, 8
      %s354 = scalar_lea.vmem %s2, %s353
      // Predicated region
      $region33: #{mlp_forward.3} parent=27 // pred_check
        %p355 = pneg %p97
      $region34: #{mlp_forward.3} parent=27 // pred_check_branch
        %357 = sbr.rel (%p355) target = $region36
      $region35: #{mlp_forward.3} parent=27 // pred_region
        _
      $region36: #{mlp_forward.3} parent=27 // pred_fallthru
        _
      // Predicated region
      $region37: #{mlp_forward.3} parent=27 // pred_check
        %p358 = pneg %p118
      $region38: #{mlp_forward.3} parent=27 // pred_check_branch
        %360 = sbr.rel (%p358) target = $region40
      $region39: #{mlp_forward.3} parent=27 // pred_region
        _
      $region40: #{mlp_forward.3} parent=27 // pred_fallthru
        _
      // Predicated region
      $region41: #{mlp_forward.3} parent=27 // pred_check
        %p361 = pneg %p139
      $region42: #{mlp_forward.3} parent=27 // pred_check_branch
        %363 = sbr.rel (%p361) target = $region44
      $region43: #{mlp_forward.3} parent=27 // pred_region
        _
      $region44: #{mlp_forward.3} parent=27 // pred_fallthru
        _
      // Predicated region
      $region45: #{mlp_forward.3} parent=27 // pred_check
        %p364 = pneg %p118
      $region46: #{mlp_forward.3} parent=27 // pred_check_branch
        %366 = sbr.rel (%p364) target = $region48
      $region47: #{mlp_forward.3} parent=27 // pred_region
        _
      $region48: #{mlp_forward.3} parent=27 // pred_fallthru
        _
      // Predicated region
      $region49: #{mlp_forward.3} parent=27 // pred_check
        %p367 = pneg %p139
      $region50: #{mlp_forward.3} parent=27 // pred_check_branch
        %369 = sbr.rel (%p367) target = $region52
      $region51: #{mlp_forward.3} parent=27 // pred_region
        _
      $region52: #{mlp_forward.3} parent=27 // pred_fallthru
        _
    $region28: #{mlp_forward.3} parent=5 // pred_fallthru
      _
    %p370 = scmp.le.s32.totalorder 2, %s11
    // Predicated region
    $region53: #{mlp_forward.3} parent=5 // pred_check
      %p371 = pneg %p370
    $region54: #{mlp_forward.3} parent=5 // pred_check_branch
      %373 = sbr.rel (%p371) target = $region56
    $region55: #{mlp_forward.3} parent=5 // pred_region
      %s374 = ssub.s32 %s11, 2
      // Predicated region
      $region57: #{mlp_forward.3} parent=55 // pred_check
        %p375 = pneg %p103
      $region58: #{mlp_forward.3} parent=55 // pred_check_branch
        %377 = sbr.rel (%p375) target = $region60
      $region59: #{mlp_forward.3} parent=55 // pred_region
        %p378 = scmp.lt.s32.totalorder %s22, 1
        %s379 = scalar_select %p378, %s22, 1
        %p380 = scmp.lt.s32.totalorder %s23, 0
        %s381 = scalar_select %p380, %s23, 0
        %s382 = smul.addr %s379, 2
        %s383 = sadd.s32 %s381, %s382
        %s384 = smul.addr %s383, 8
        %s385 = scalar_lea.vmem %s2, %s384
      $region60: #{mlp_forward.3} parent=55 // pred_fallthru
        _
    $region56: #{mlp_forward.3} parent=5 // pred_fallthru
      _
  $region6: #{mlp_forward.3} parent=0 // loop_footer
    %s15 = sadd.s32 1, %s11
  $region7: #{mlp_forward.3} parent=0 // loop_footer_branch
    %10 = sbr.rel target = $region3
  $region8: #{mlp_forward.3} parent=0 // loop_exit
    _

// kernel: mlp_forward.5
$region0: #{mlp_forward.5}
  #allocation0 [shape = 'u32[]', space=smem, size = 0x4, offset = 0x4, fixed_abs, tag = 'smem constant byte address 0x4 - core index']
  #allocation1 [shape = 'u32[144,128]{1,0:T(1,128)}', space=vmem, size = 0x12000, scoped, tag = 'internal scratch']
  %s0 = inlined_call_operand.vmem [shape: f32[32,1], index: 0, kind: input, shape index: {}]
  %s1 = inlined_call_operand.vmem [shape: f32[32,1], index: 1, kind: input, shape index: {}]
  %s2 = inlined_call_operand.vmem [shape: f32[32,1], index: 2, kind: input, shape index: {}]
  %s3 = inlined_call_operand.vmem [shape: f32[32,1], index: 3, kind: input, shape index: {}]
  %s4 = inlined_call_operand.vmem [shape: f32[2,32,16], index: 4, kind: input, shape index: {}]
  %s5 = inlined_call_operand.vmem [shape: f32[2,32,16], index: 5, kind: output, shape index: {}]
  %s6 = sld [smem:[#allocation0]]
  $region53: #{mlp_forward.5} parent=0
    _
  %s8 = ssub.s32 1, %s6
  %s9 = scalar_select 0, %s8, %s6
  loop: start=0, step=1, limit=4
  $region2: #{mlp_forward.5} parent=0 // loop_pre_header
    _
  $region3: #{mlp_forward.5} parent=0 // loop_header
    %s11 = sphi 0, %s15
    %p12 = scmp.ge.s32.totalorder %s11, 4
    %s18 = sphi 0, %s30
    %s19 = sphi 0, %s26
    %s20 = sphi 0, %s18
    %s21 = sphi 0, %s19
    %s22 = sphi 0, %s20
    %s23 = sphi 0, %s21
    %s31 = sphi 0, %s31
    %s33 = sphi 0, %s31
    %s34 = sphi 0, %s33
    %s48 = sphi 0, %s34
    %s52 = sphi 0, %s52
    %s54 = sphi 0, %s52
    %s55 = sphi 0, %s54
    %s69 = sphi 0, %s55
    %s73 = sphi 0, %s73
    %s75 = sphi 0, %s73
    %s76 = sphi 0, %s75
    %s90 = sphi 0, %s76
    %s94 = sphi 0, %s94
    %s96 = sphi 0, %s94
    %s97 = sphi 0, %s96
    %s111 = sphi 0, %s97
    %s119 = sphi 0, %s121
    %s122 = sphi 0, %s119
    %s123 = sphi 0, %s122
    %s139 = sphi 0, %s123
    %s147 = sphi 0, %s149
    %s150 = sphi 0, %s147
    %s151 = sphi 0, %s150
    %s167 = sphi 0, %s151
  $region4: #{mlp_forward.5} parent=0 // loop_header_branch
    %14 = sbr.rel (%p12) target = $region8
  $region5: #{mlp_forward.5} parent=0 // loop_body
    %s16 = ssub.s32 %s11, 1
    %s17 = ssub.s32 %s11, 2
    %s24 = sadd.s32 1, %s19
    %p25 = scmp.ge.s32.totalorder %s24, 1
    %s26 = scalar_select %p25, 0, %s24
    %s27 = sadd.s32 1, %s18
    %s28 = scalar_select %p25, %s27, %s18
    %p29 = scmp.ge.s32.totalorder %s28, 2
    %s30 = scalar_select %p29, 0, %s28
    %s32 = sadd.s32 %s31, 1
    %p35 = scmp.eq.s32.totalorder %s11, 1
    %p36 = scmp.ne.s32.totalorder %s31, %s33
    %p37 = scmp.eq.s32.totalorder %s11, 0
    %p38 = por %p36, %p37
    %p39 = scmp.ne.s32.totalorder %s31, %s33
    %p40 = scmp.eq.s32.totalorder %s16, 1
    %p41 = por %p39, %p40
    %p42 = scmp.ne.s32.totalorder %s33, %s34
    %p43 = scmp.eq.s32.totalorder %s16, 0
    %p44 = por %p42, %p43
    %p45 = scmp.ne.s32.totalorder %s33, %s34
    %p46 = scmp.eq.s32.totalorder %s17, 1
    %p47 = por %p45, %p46
    %p49 = scmp.ne.s32.totalorder %s34, %s48
    %p50 = scmp.eq.s32.totalorder %s17, 0
    %p51 = por %p49, %p50
    %s53 = sadd.s32 %s52, 1
    %p56 = scmp.eq.s32.totalorder %s11, 1
    %p57 = scmp.ne.s32.totalorder %s52, %s54
    %p58 = scmp.eq.s32.totalorder %s11, 0
    %p59 = por %p57, %p58
    %p60 = scmp.ne.s32.totalorder %s52, %s54
    %p61 = scmp.eq.s32.totalorder %s16, 1
    %p62 = por %p60, %p61
    %p63 = scmp.ne.s32.totalorder %s54, %s55
    %p64 = scmp.eq.s32.totalorder %s16, 0
    %p65 = por %p63, %p64
    %p66 = scmp.ne.s32.totalorder %s54, %s55
    %p67 = scmp.eq.s32.totalorder %s17, 1
    %p68 = por %p66, %p67
    %p70 = scmp.ne.s32.totalorder %s55, %s69
    %p71 = scmp.eq.s32.totalorder %s17, 0
    %p72 = por %p70, %p71
    %s74 = sadd.s32 %s73, 1
    %p77 = scmp.eq.s32.totalorder %s11, 1
    %p78 = scmp.ne.s32.totalorder %s73, %s75
    %p79 = scmp.eq.s32.totalorder %s11, 0
    %p80 = por %p78, %p79
    %p81 = scmp.ne.s32.totalorder %s73, %s75
    %p82 = scmp.eq.s32.totalorder %s16, 1
    %p83 = por %p81, %p82
    %p84 = scmp.ne.s32.totalorder %s75, %s76
    %p85 = scmp.eq.s32.totalorder %s16, 0
    %p86 = por %p84, %p85
    %p87 = scmp.ne.s32.totalorder %s75, %s76
    %p88 = scmp.eq.s32.totalorder %s17, 1
    %p89 = por %p87, %p88
    %p91 = scmp.ne.s32.totalorder %s76, %s90
    %p92 = scmp.eq.s32.totalorder %s17, 0
    %p93 = por %p91, %p92
    %s95 = sadd.s32 %s94, 1
    %p98 = scmp.eq.s32.totalorder %s11, 1
    %p99 = scmp.ne.s32.totalorder %s94, %s96
    %p100 = scmp.eq.s32.totalorder %s11, 0
    %p101 = por %p99, %p100
    %p102 = scmp.ne.s32.totalorder %s94, %s96
    %p103 = scmp.eq.s32.totalorder %s16, 1
    %p104 = por %p102, %p103
    %p105 = scmp.ne.s32.totalorder %s96, %s97
    %p106 = scmp.eq.s32.totalorder %s16, 0
    %p107 = por %p105, %p106
    %p108 = scmp.ne.s32.totalorder %s96, %s97
    %p109 = scmp.eq.s32.totalorder %s17, 1
    %p110 = por %p108, %p109
    %p112 = scmp.ne.s32.totalorder %s97, %s111
    %p113 = scmp.eq.s32.totalorder %s17, 0
    %p114 = por %p112, %p113
    %s115 = ssub.s32 %s18, %s30
    %s116 = ssub.s32 %s19, %s26
    %s117 = sor.u32 %s115, %s116
    %p118 = scmp.eq.s32.totalorder %s117, 0
    %s120 = sadd.s32 %s119, 1
    %s121 = scalar_select %p118, %s119, %s120
    %p124 = pneg %p118
    %p125 = scmp.eq.s32.totalorder %s11, 1
    %p126 = por %p124, %p125
    %p127 = scmp.ne.s32.totalorder %s119, %s122
    %p128 = scmp.eq.s32.totalorder %s11, 0
    %p129 = por %p127, %p128
    %p130 = scmp.ne.s32.totalorder %s119, %s122
    %p131 = scmp.eq.s32.totalorder %s16, 1
    %p132 = por %p130, %p131
    %p133 = scmp.ne.s32.totalorder %s122, %s123
    %p134 = scmp.eq.s32.totalorder %s16, 0
    %p135 = por %p133, %p134
    %p136 = scmp.ne.s32.totalorder %s122, %s123
    %p137 = scmp.eq.s32.totalorder %s17, 1
    %p138 = por %p136, %p137
    %p140 = scmp.ne.s32.totalorder %s123, %s139
    %p141 = scmp.eq.s32.totalorder %s17, 0
    %p142 = por %p140, %p141
    %s143 = ssub.s32 %s18, %s30
    %s144 = ssub.s32 %s19, %s26
    %s145 = sor.u32 %s143, %s144
    %p146 = scmp.eq.s32.totalorder %s145, 0
    %s148 = sadd.s32 %s147, 1
    %s149 = scalar_select %p146, %s147, %s148
    %p152 = pneg %p146
    %p153 = scmp.eq.s32.totalorder %s11, 1
    %p154 = por %p152, %p153
    %p155 = scmp.ne.s32.totalorder %s147, %s150
    %p156 = scmp.eq.s32.totalorder %s11, 0
    %p157 = por %p155, %p156
    %p158 = scmp.ne.s32.totalorder %s147, %s150
    %p159 = scmp.eq.s32.totalorder %s16, 1
    %p160 = por %p158, %p159
    %p161 = scmp.ne.s32.totalorder %s150, %s151
    %p162 = scmp.eq.s32.totalorder %s16, 0
    %p163 = por %p161, %p162
    %p164 = scmp.ne.s32.totalorder %s150, %s151
    %p165 = scmp.eq.s32.totalorder %s17, 1
    %p166 = por %p164, %p165
    %p168 = scmp.ne.s32.totalorder %s151, %s167
    %p169 = scmp.eq.s32.totalorder %s17, 0
    %p170 = por %p168, %p169
    %p171 = scmp.le.s32.totalorder 1, %s11
    %p172 = scmp.lt.s32.totalorder %s11, 3
    %p173 = pnand %p171, %p172
    %p174 = pneg %p173
    // Predicated region
    $region9: #{mlp_forward.5} parent=5 // pred_check
      _
    $region10: #{mlp_forward.5} parent=5 // pred_check_branch
      %176 = sbr.rel (%p173) target = $region12
    $region11: #{mlp_forward.5} parent=5 // pred_region
      %s177 = ssub.s32 %s11, 1
      // Predicated region
      $region13: #{mlp_forward.5} parent=11 // pred_check
        %p178 = pneg %p44
      $region14: #{mlp_forward.5} parent=11 // pred_check_branch
        %180 = sbr.rel (%p178) target = $region16
      $region15: #{mlp_forward.5} parent=11 // pred_region
        _
      $region16: #{mlp_forward.5} parent=11 // pred_fallthru
        _
      // Predicated region
      $region17: #{mlp_forward.5} parent=11 // pred_check
        %p181 = pneg %p65
      $region18: #{mlp_forward.5} parent=11 // pred_check_branch
        %183 = sbr.rel (%p181) target = $region20
      $region19: #{mlp_forward.5} parent=11 // pred_region
        _
      $region20: #{mlp_forward.5} parent=11 // pred_fallthru
        _
      // Predicated region
      $region21: #{mlp_forward.5} parent=11 // pred_check
        %p184 = pneg %p86
      $region22: #{mlp_forward.5} parent=11 // pred_check_branch
        %186 = sbr.rel (%p184) target = $region24
      $region23: #{mlp_forward.5} parent=11 // pred_region
        _
      $region24: #{mlp_forward.5} parent=11 // pred_fallthru
        _
      // Predicated region
      $region25: #{mlp_forward.5} parent=11 // pred_check
        %p187 = pneg %p107
      $region26: #{mlp_forward.5} parent=11 // pred_check_branch
        %189 = sbr.rel (%p187) target = $region28
      $region27: #{mlp_forward.5} parent=11 // pred_region
        _
      $region28: #{mlp_forward.5} parent=11 // pred_fallthru
        _
    $region12: #{mlp_forward.5} parent=5 // pred_fallthru
      _
    %p190 = scmp.lt.s32.totalorder %s11, 2
    // Predicated region
    $region29: #{mlp_forward.5} parent=5 // pred_check
      %p191 = pneg %p190
    $region30: #{mlp_forward.5} parent=5 // pred_check_branch
      %193 = sbr.rel (%p191) target = $region32
    $region31: #{mlp_forward.5} parent=5 // pred_region
      // Predicated region
      $region33: #{mlp_forward.5} parent=31 // pred_check
        %p194 = pneg %p129
      $region34: #{mlp_forward.5} parent=31 // pred_check_branch
        %196 = sbr.rel (%p194) target = $region36
      $region35: #{mlp_forward.5} parent=31 // pred_region
        %p197 = scmp.lt.s32.totalorder %s18, 1
        %s198 = scalar_select %p197, %s18, 1
        %p199 = scmp.lt.s32.totalorder %s19, 0
        %s200 = scalar_select %p199, %s19, 0
        %s201 = smul.addr %s198, 4
        %s202 = sadd.s32 %s200, %s201
        %s203 = smul.addr %s202, 8
        %s204 = scalar_lea.vmem %s4, %s203
      $region36: #{mlp_forward.5} parent=31 // pred_fallthru
        _
    $region32: #{mlp_forward.5} parent=5 // pred_fallthru
      _
    %p205 = scmp.le.s32.totalorder 1, %s11
    %p206 = scmp.lt.s32.totalorder %s11, 3
    %p207 = pnand %p205, %p206
    %p208 = pneg %p207
    // Predicated region
    $region37: #{mlp_forward.5} parent=5 // pred_check
      _
    $region38: #{mlp_forward.5} parent=5 // pred_check_branch
      %210 = sbr.rel (%p207) target = $region40
    $region39: #{mlp_forward.5} parent=5 // pred_region
      %s211 = ssub.s32 %s11, 1
      %p212 = pneg %p44
      %p213 = pneg %p41
      %p214 = pneg %p65
      %p215 = pneg %p62
      %p216 = pneg %p86
      %p217 = pneg %p83
      %p218 = pneg %p107
      %p219 = pneg %p104
      %p220 = scmp.lt.s32.totalorder %s20, 1
      %s221 = scalar_select %p220, %s20, 1
      %p222 = scmp.lt.s32.totalorder %s21, 0
      %s223 = scalar_select %p222, %s21, 0
      %s224 = smul.addr %s221, 4
      %s225 = sadd.s32 %s223, %s224
      %s226 = smul.addr %s225, 8
      %s227 = scalar_lea.vmem %s4, %s226
      %p228 = pneg %p135
      %p229 = pneg %p132
      %p230 = pneg %p163
      %p231 = pneg %p160
      %p232 = scmp.lt.s32.totalorder %s20, 1
      %s233 = scalar_select %p232, %s20, 1
      %p234 = scmp.lt.s32.totalorder %s21, 0
      %s235 = scalar_select %p234, %s21, 0
      %s236 = smul.addr %s233, 4
      %s237 = sadd.s32 %s235, %s236
      %s238 = smul.addr %s237, 8
      %s239 = scalar_lea.vmem %s5, %s238
      %p240 = scmp.lt.s32.totalorder %s20, 1
      %s241 = scalar_select %p240, %s20, 1
      %p242 = scmp.lt.s32.totalorder %s21, 0
      %s243 = scalar_select %p242, %s21, 0
      %s244 = smul.addr %s241, 4
      %s245 = sadd.s32 %s243, %s244
      %s246 = smul.addr %s245, 8
      %s247 = scalar_lea.vmem %s4, %s246
      %p248 = scmp.lt.s32.totalorder %s20, 1
      %s249 = scalar_select %p248, %s20, 1
      %p250 = scmp.lt.s32.totalorder %s21, 0
      %s251 = scalar_select %p250, %s21, 0
      %s252 = smul.addr %s249, 4
      %s253 = sadd.s32 %s251, %s252
      %s254 = smul.addr %s253, 8
      %s255 = scalar_lea.vmem %s5, %s254
      %v256 = vld [vmem:[%s0] sm:$0xff]
      %v257 = vld [vmem:[%s0 + $0x8] sm:$0xff]
      %v258 = vld [vmem:[%s0 + $0x10] sm:$0xff]
      %v259 = vld [vmem:[%s0 + $0x18] sm:$0xff]
      %v260 = vld [vmem:[%s1] sm:$0xff]
      %v261 = vld [vmem:[%s1 + $0x8] sm:$0xff]
      %v262 = vld [vmem:[%s1 + $0x10] sm:$0xff]
      %v263 = vld [vmem:[%s1 + $0x18] sm:$0xff]
      %v264 = vld [vmem:[%s2] sm:$0xff]
      %v265 = vld [vmem:[%s2 + $0x8] sm:$0xff]
      %v266 = vld [vmem:[%s2 + $0x10] sm:$0xff]
      %v267 = vld [vmem:[%s2 + $0x18] sm:$0xff]
      %v268 = vld [vmem:[%s3] sm:$0xff]
      %v269 = vld [vmem:[%s3 + $0x8] sm:$0xff]
      %v270 = vld [vmem:[%s3 + $0x10] sm:$0xff]
      %v271 = vld [vmem:[%s3 + $0x18] sm:$0xff]
      %v272 = vmul.f32 %v256, 0.03125
      %v273 = vmul.f32 %v257, 0.03125
      %v274 = vmul.f32 %v258, 0.03125
      %v275 = vmul.f32 %v259, 0.03125
      %v276 = vmul.f32 %v260, 0.03125
      %v277 = vmul.f32 %v261, 0.03125
      %v278 = vmul.f32 %v262, 0.03125
      %v279 = vmul.f32 %v263, 0.03125
      %v280 = vmul.f32 %v272, %v272
      %v281 = vmul.f32 %v273, %v273
      %v282 = vmul.f32 %v274, %v274
      %v283 = vmul.f32 %v275, %v275
      %v284 = vsub.f32 %v276, %v280
      %v285 = vsub.f32 %v277, %v281
      %v286 = vsub.f32 %v278, %v282
      %v287 = vsub.f32 %v279, %v283
      %v288 = vmax.f32 %v284, 0.0
      %v289 = vmax.f32 %v285, 0.0
      %v290 = vmax.f32 %v286, 0.0
      %v291 = vmax.f32 %v287, 0.0
      %v292 = vadd.f32 %v288, 1e-05
      %v293 = vadd.f32 %v289, 1e-05
      %v294 = vadd.f32 %v290, 1e-05
      %v295 = vadd.f32 %v291, 1e-05
      %v296 = vrsqrt.pop %v292
      %v297 = vrsqrt.pop %v293
      %v298 = vrsqrt.pop %v294
      %v299 = vrsqrt.pop %v295
      %v300 = vmul.f32 %v264, %v296
      %v301 = vmul.f32 %v265, %v297
      %v302 = vmul.f32 %v266, %v298
      %v303 = vmul.f32 %v267, %v299
      %v304 = vmul.f32 %v272, %v300
      %v305 = vmul.f32 %v273, %v301
      %v306 = vmul.f32 %v274, %v302
      %v307 = vmul.f32 %v275, %v303
      %v308 = vsub.f32 %v268, %v304
      %v309 = vsub.f32 %v269, %v305
      %v310 = vsub.f32 %v270, %v306
      %v311 = vsub.f32 %v271, %v307
      %v312 = vld [vmem:[%s247] sm:$0xff]
      %v313 = vld [vmem:[%s247 + $0x8] sm:$0xff]
      %v314 = vld [vmem:[%s247 + $0x10] sm:$0xff]
      %v315 = vld [vmem:[%s247 + $0x18] sm:$0xff]
      %317 = vset.pattern.permute.xlu0 0
      %318 = vperm.xlu0 %317, %v300
      %v319 = vpop.permute.xlu0 %318
      %322 = vset.pattern.permute.xlu0 0
      %323 = vperm.xlu0 %322, %v301
      %v324 = vpop.permute.xlu0 %323
      %327 = vset.pattern.permute.xlu0 0
      %328 = vperm.xlu0 %327, %v302
      %v329 = vpop.permute.xlu0 %328
      %332 = vset.pattern.permute.xlu0 0
      %333 = vperm.xlu0 %332, %v303
      %v334 = vpop.permute.xlu0 %333
      %v336 = vmul.f32 %v312, %v319
      %v337 = vmul.f32 %v313, %v324
      %v338 = vmul.f32 %v314, %v329
      %v339 = vmul.f32 %v315, %v334
      %341 = vset.pattern.permute.xlu0 0
      %342 = vperm.xlu0 %341, %v308
      %v343 = vpop.permute.xlu0 %342
      %346 = vset.pattern.permute.xlu0 0
      %347 = vperm.xlu0 %346, %v309
      %v348 = vpop.permute.xlu0 %347
      %351 = vset.pattern.permute.xlu0 0
      %352 = vperm.xlu0 %351, %v310
      %v353 = vpop.permute.xlu0 %352
      %356 = vset.pattern.permute.xlu0 0
      %357 = vperm.xlu0 %356, %v311
      %v358 = vpop.permute.xlu0 %357
      %v360 = vadd.f32 %v336, %v343
      %v361 = vadd.f32 %v337, %v348
      %v362 = vadd.f32 %v338, %v353
      %v363 = vadd.f32 %v339, %v358
      %v364 = vmax.f32 %v360, 0.0
      %v365 = vmax.f32 %v361, 0.0
      %v366 = vmax.f32 %v362, 0.0
      %v367 = vmax.f32 %v363, 0.0
      %vm368 = vcmask 130048
      %369 = vst.msk [vmem:[%s255] sm:$0xff] %vm368, %v364
      %370 = vst.msk [vmem:[%s255 + $0x8] sm:$0xff] %vm368, %v365
      %371 = vst.msk [vmem:[%s255 + $0x10] sm:$0xff] %vm368, %v366
      %372 = vst.msk [vmem:[%s255 + $0x18] sm:$0xff] %vm368, %v367
      %p373 = scmp.lt.s32.totalorder %s20, 1
      %s374 = scalar_select %p373, %s20, 1
      %p375 = scmp.lt.s32.totalorder %s21, 0
      %s376 = scalar_select %p375, %s21, 0
      %s377 = smul.addr %s374, 4
      %s378 = sadd.s32 %s376, %s377
      %s379 = smul.addr %s378, 8
      %s380 = scalar_lea.vmem %s5, %s379
      // Predicated region
      $region41: #{mlp_forward.5} parent=39 // pred_check
        %p381 = pneg %p160
      $region42: #{mlp_forward.5} parent=39 // pred_check_branch
        %383 = sbr.rel (%p381) target = $region44
      $region43: #{mlp_forward.5} parent=39 // pred_region
        _
      $region44: #{mlp_forward.5} parent=39 // pred_fallthru
        _
    $region40: #{mlp_forward.5} parent=5 // pred_fallthru
      _
    %p384 = scmp.le.s32.totalorder 2, %s11
    // Predicated region
    $region45: #{mlp_forward.5} parent=5 // pred_check
      %p385 = pneg %p384
    $region46: #{mlp_forward.5} parent=5 // pred_check_branch
      %387 = sbr.rel (%p385) target = $region48
    $region47: #{mlp_forward.5} parent=5 // pred_region
      %s388 = ssub.s32 %s11, 2
      // Predicated region
      $region49: #{mlp_forward.5} parent=47 // pred_check
        %p389 = pneg %p166
      $region50: #{mlp_forward.5} parent=47 // pred_check_branch
        %391 = sbr.rel (%p389) target = $region52
      $region51: #{mlp_forward.5} parent=47 // pred_region
        %p392 = scmp.lt.s32.totalorder %s22, 1
        %s393 = scalar_select %p392, %s22, 1
        %p394 = scmp.lt.s32.totalorder %s23, 0
        %s395 = scalar_select %p394, %s23, 0
        %s396 = smul.addr %s393, 4
        %s397 = sadd.s32 %s395, %s396
        %s398 = smul.addr %s397, 8
        %s399 = scalar_lea.vmem %s5, %s398
      $region52: #{mlp_forward.5} parent=47 // pred_fallthru
        _
    $region48: #{mlp_forward.5} parent=5 // pred_fallthru
      _
  $region6: #{mlp_forward.5} parent=0 // loop_footer
    %s15 = sadd.s32 1, %s11
  $region7: #{mlp_forward.5} parent=0 // loop_footer_branch
    %10 = sbr.rel target = $region3
  $region8: #{mlp_forward.5} parent=0 // loop_exit
    _

// kernel: mlp_forward.4
$region0: #{mlp_forward.4}
  #allocation0 [shape = 'u32[]', space=smem, size = 0x4, offset = 0x4, fixed_abs, tag = 'smem constant byte address 0x4 - core index']
  #allocation1 [shape = 'u32[144,128]{1,0:T(1,128)}', space=vmem, size = 0x12000, scoped, tag = 'internal scratch']
  %s0 = inlined_call_operand.vmem [shape: f32[16,1], index: 0, kind: input, shape index: {}]
  %s1 = inlined_call_operand.vmem [shape: f32[16,1], index: 1, kind: input, shape index: {}]
  %s2 = inlined_call_operand.vmem [shape: f32[16,1], index: 2, kind: input, shape index: {}]
  %s3 = inlined_call_operand.vmem [shape: f32[16,1], index: 3, kind: input, shape index: {}]
  %s4 = inlined_call_operand.vmem [shape: f32[2,16,16], index: 4, kind: input, shape index: {}]
  %s5 = inlined_call_operand.vmem [shape: f32[32,16], index: 5, kind: input, shape index: {}]
  %s6 = inlined_call_operand.vmem [shape: f32[2,32,16], index: 6, kind: output, shape index: {0}]
  %s7 = inlined_call_operand.vmem [shape: f32[32,1], index: 7, kind: output, shape index: {1}]
  %s8 = inlined_call_operand.vmem [shape: f32[32,1], index: 8, kind: output, shape index: {2}]
  %9 = xla_tuple %s6, %s7, %s8
  %s10 = sld [smem:[#allocation0]]
  $region77: #{mlp_forward.4} parent=0
    _
  %s12 = ssub.s32 1, %s10
  %s13 = scalar_select 0, %s12, %s10
  loop: start=0, step=1, limit=4
  $region2: #{mlp_forward.4} parent=0 // loop_pre_header
    _
  $region3: #{mlp_forward.4} parent=0 // loop_header
    %s15 = sphi 0, %s19
    %p16 = scmp.ge.s32.totalorder %s15, 4
    %s22 = sphi 0, %s34
    %s23 = sphi 0, %s30
    %s24 = sphi 0, %s22
    %s25 = sphi 0, %s23
    %s26 = sphi 0, %s24
    %s27 = sphi 0, %s25
    %s35 = sphi 0, %s35
    %s37 = sphi 0, %s35
    %s38 = sphi 0, %s37
    %s52 = sphi 0, %s38
    %s56 = sphi 0, %s56
    %s58 = sphi 0, %s56
    %s59 = sphi 0, %s58
    %s73 = sphi 0, %s59
    %s77 = sphi 0, %s77
    %s79 = sphi 0, %s77
    %s80 = sphi 0, %s79
    %s94 = sphi 0, %s80
    %s98 = sphi 0, %s98
    %s100 = sphi 0, %s98
    %s101 = sphi 0, %s100
    %s115 = sphi 0, %s101
    %s123 = sphi 0, %s125
    %s126 = sphi 0, %s123
    %s127 = sphi 0, %s126
    %s143 = sphi 0, %s127
    %s147 = sphi 0, %s147
    %s149 = sphi 0, %s147
    %s150 = sphi 0, %s149
    %s164 = sphi 0, %s150
    %s172 = sphi 0, %s174
    %s175 = sphi 0, %s172
    %s176 = sphi 0, %s175
    %s192 = sphi 0, %s176
    %s196 = sphi 0, %s196
    %s198 = sphi 0, %s196
    %s199 = sphi 0, %s198
    %s213 = sphi 0, %s199
    %s217 = sphi 0, %s217
    %s219 = sphi 0, %s217
    %s220 = sphi 0, %s219
    %s234 = sphi 0, %s220
  $region4: #{mlp_forward.4} parent=0 // loop_header_branch
    %18 = sbr.rel (%p16) target = $region8
  $region5: #{mlp_forward.4} parent=0 // loop_body
    %s20 = ssub.s32 %s15, 1
    %s21 = ssub.s32 %s15, 2
    %s28 = sadd.s32 1, %s23
    %p29 = scmp.ge.s32.totalorder %s28, 1
    %s30 = scalar_select %p29, 0, %s28
    %s31 = sadd.s32 1, %s22
    %s32 = scalar_select %p29, %s31, %s22
    %p33 = scmp.ge.s32.totalorder %s32, 2
    %s34 = scalar_select %p33, 0, %s32
    %s36 = sadd.s32 %s35, 1
    %p39 = scmp.eq.s32.totalorder %s15, 1
    %p40 = scmp.ne.s32.totalorder %s35, %s37
    %p41 = scmp.eq.s32.totalorder %s15, 0
    %p42 = por %p40, %p41
    %p43 = scmp.ne.s32.totalorder %s35, %s37
    %p44 = scmp.eq.s32.totalorder %s20, 1
    %p45 = por %p43, %p44
    %p46 = scmp.ne.s32.totalorder %s37, %s38
    %p47 = scmp.eq.s32.totalorder %s20, 0
    %p48 = por %p46, %p47
    %p49 = scmp.ne.s32.totalorder %s37, %s38
    %p50 = scmp.eq.s32.totalorder %s21, 1
    %p51 = por %p49, %p50
    %p53 = scmp.ne.s32.totalorder %s38, %s52
    %p54 = scmp.eq.s32.totalorder %s21, 0
    %p55 = por %p53, %p54
    %s57 = sadd.s32 %s56, 1
    %p60 = scmp.eq.s32.totalorder %s15, 1
    %p61 = scmp.ne.s32.totalorder %s56, %s58
    %p62 = scmp.eq.s32.totalorder %s15, 0
    %p63 = por %p61, %p62
    %p64 = scmp.ne.s32.totalorder %s56, %s58
    %p65 = scmp.eq.s32.totalorder %s20, 1
    %p66 = por %p64, %p65
    %p67 = scmp.ne.s32.totalorder %s58, %s59
    %p68 = scmp.eq.s32.totalorder %s20, 0
    %p69 = por %p67, %p68
    %p70 = scmp.ne.s32.totalorder %s58, %s59
    %p71 = scmp.eq.s32.totalorder %s21, 1
    %p72 = por %p70, %p71
    %p74 = scmp.ne.s32.totalorder %s59, %s73
    %p75 = scmp.eq.s32.totalorder %s21, 0
    %p76 = por %p74, %p75
    %s78 = sadd.s32 %s77, 1
    %p81 = scmp.eq.s32.totalorder %s15, 1
    %p82 = scmp.ne.s32.totalorder %s77, %s79
    %p83 = scmp.eq.s32.totalorder %s15, 0
    %p84 = por %p82, %p83
    %p85 = scmp.ne.s32.totalorder %s77, %s79
    %p86 = scmp.eq.s32.totalorder %s20, 1
    %p87 = por %p85, %p86
    %p88 = scmp.ne.s32.totalorder %s79, %s80
    %p89 = scmp.eq.s32.totalorder %s20, 0
    %p90 = por %p88, %p89
    %p91 = scmp.ne.s32.totalorder %s79, %s80
    %p92 = scmp.eq.s32.totalorder %s21, 1
    %p93 = por %p91, %p92
    %p95 = scmp.ne.s32.totalorder %s80, %s94
    %p96 = scmp.eq.s32.totalorder %s21, 0
    %p97 = por %p95, %p96
    %s99 = sadd.s32 %s98, 1
    %p102 = scmp.eq.s32.totalorder %s15, 1
    %p103 = scmp.ne.s32.totalorder %s98, %s100
    %p104 = scmp.eq.s32.totalorder %s15, 0
    %p105 = por %p103, %p104
    %p106 = scmp.ne.s32.totalorder %s98, %s100
    %p107 = scmp.eq.s32.totalorder %s20, 1
    %p108 = por %p106, %p107
    %p109 = scmp.ne.s32.totalorder %s100, %s101
    %p110 = scmp.eq.s32.totalorder %s20, 0
    %p111 = por %p109, %p110
    %p112 = scmp.ne.s32.totalorder %s100, %s101
    %p113 = scmp.eq.s32.totalorder %s21, 1
    %p114 = por %p112, %p113
    %p116 = scmp.ne.s32.totalorder %s101, %s115
    %p117 = scmp.eq.s32.totalorder %s21, 0
    %p118 = por %p116, %p117
    %s119 = ssub.s32 %s22, %s34
    %s120 = ssub.s32 %s23, %s30
    %s121 = sor.u32 %s119, %s120
    %p122 = scmp.eq.s32.totalorder %s121, 0
    %s124 = sadd.s32 %s123, 1
    %s125 = scalar_select %p122, %s123, %s124
    %p128 = pneg %p122
    %p129 = scmp.eq.s32.totalorder %s15, 1
    %p130 = por %p128, %p129
    %p131 = scmp.ne.s32.totalorder %s123, %s126
    %p132 = scmp.eq.s32.totalorder %s15, 0
    %p133 = por %p131, %p132
    %p134 = scmp.ne.s32.totalorder %s123, %s126
    %p135 = scmp.eq.s32.totalorder %s20, 1
    %p136 = por %p134, %p135
    %p137 = scmp.ne.s32.totalorder %s126, %s127
    %p138 = scmp.eq.s32.totalorder %s20, 0
    %p139 = por %p137, %p138
    %p140 = scmp.ne.s32.totalorder %s126, %s127
    %p141 = scmp.eq.s32.totalorder %s21, 1
    %p142 = por %p140, %p141
    %p144 = scmp.ne.s32.totalorder %s127, %s143
    %p145 = scmp.eq.s32.totalorder %s21, 0
    %p146 = por %p144, %p145
    %s148 = sadd.s32 %s147, 1
    %p151 = scmp.eq.s32.totalorder %s15, 1
    %p152 = scmp.ne.s32.totalorder %s147, %s149
    %p153 = scmp.eq.s32.totalorder %s15, 0
    %p154 = por %p152, %p153
    %p155 = scmp.ne.s32.totalorder %s147, %s149
    %p156 = scmp.eq.s32.totalorder %s20, 1
    %p157 = por %p155, %p156
    %p158 = scmp.ne.s32.totalorder %s149, %s150
    %p159 = scmp.eq.s32.totalorder %s20, 0
    %p160 = por %p158, %p159
    %p161 = scmp.ne.s32.totalorder %s149, %s150
    %p162 = scmp.eq.s32.totalorder %s21, 1
    %p163 = por %p161, %p162
    %p165 = scmp.ne.s32.totalorder %s150, %s164
    %p166 = scmp.eq.s32.totalorder %s21, 0
    %p167 = por %p165, %p166
    %s168 = ssub.s32 %s22, %s34
    %s169 = ssub.s32 %s23, %s30
    %s170 = sor.u32 %s168, %s169
    %p171 = scmp.eq.s32.totalorder %s170, 0
    %s173 = sadd.s32 %s172, 1
    %s174 = scalar_select %p171, %s172, %s173
    %p177 = pneg %p171
    %p178 = scmp.eq.s32.totalorder %s15, 1
    %p179 = por %p177, %p178
    %p180 = scmp.ne.s32.totalorder %s172, %s175
    %p181 = scmp.eq.s32.totalorder %s15, 0
    %p182 = por %p180, %p181
    %p183 = scmp.ne.s32.totalorder %s172, %s175
    %p184 = scmp.eq.s32.totalorder %s20, 1
    %p185 = por %p183, %p184
    %p186 = scmp.ne.s32.totalorder %s175, %s176
    %p187 = scmp.eq.s32.totalorder %s20, 0
    %p188 = por %p186, %p187
    %p189 = scmp.ne.s32.totalorder %s175, %s176
    %p190 = scmp.eq.s32.totalorder %s21, 1
    %p191 = por %p189, %p190
    %p193 = scmp.ne.s32.totalorder %s176, %s192
    %p194 = scmp.eq.s32.totalorder %s21, 0
    %p195 = por %p193, %p194
    %s197 = sadd.s32 %s196, 1
    %p200 = scmp.eq.s32.totalorder %s15, 1
    %p201 = scmp.ne.s32.totalorder %s196, %s198
    %p202 = scmp.eq.s32.totalorder %s15, 0
    %p203 = por %p201, %p202
    %p204 = scmp.ne.s32.totalorder %s196, %s198
    %p205 = scmp.eq.s32.totalorder %s20, 1
    %p206 = por %p204, %p205
    %p207 = scmp.ne.s32.totalorder %s198, %s199
    %p208 = scmp.eq.s32.totalorder %s20, 0
    %p209 = por %p207, %p208
    %p210 = scmp.ne.s32.totalorder %s198, %s199
    %p211 = scmp.eq.s32.totalorder %s21, 1
    %p212 = por %p210, %p211
    %p214 = scmp.ne.s32.totalorder %s199, %s213
    %p215 = scmp.eq.s32.totalorder %s21, 0
    %p216 = por %p214, %p215
    %s218 = sadd.s32 %s217, 1
    %p221 = scmp.eq.s32.totalorder %s15, 1
    %p222 = scmp.ne.s32.totalorder %s217, %s219
    %p223 = scmp.eq.s32.totalorder %s15, 0
    %p224 = por %p222, %p223
    %p225 = scmp.ne.s32.totalorder %s217, %s219
    %p226 = scmp.eq.s32.totalorder %s20, 1
    %p227 = por %p225, %p226
    %p228 = scmp.ne.s32.totalorder %s219, %s220
    %p229 = scmp.eq.s32.totalorder %s20, 0
    %p230 = por %p228, %p229
    %p231 = scmp.ne.s32.totalorder %s219, %s220
    %p232 = scmp.eq.s32.totalorder %s21, 1
    %p233 = por %p231, %p232
    %p235 = scmp.ne.s32.totalorder %s220, %s234
    %p236 = scmp.eq.s32.totalorder %s21, 0
    %p237 = por %p235, %p236
    %p238 = scmp.le.s32.totalorder 1, %s15
    %p239 = scmp.lt.s32.totalorder %s15, 3
    %p240 = pnand %p238, %p239
    %p241 = pneg %p240
    // Predicated region
    $region9: #{mlp_forward.4} parent=5 // pred_check
      _
    $region10: #{mlp_forward.4} parent=5 // pred_check_branch
      %243 = sbr.rel (%p240) target = $region12
    $region11: #{mlp_forward.4} parent=5 // pred_region
      %s244 = ssub.s32 %s15, 1
      // Predicated region
      $region13: #{mlp_forward.4} parent=11 // pred_check
        %p245 = pneg %p48
      $region14: #{mlp_forward.4} parent=11 // pred_check_branch
        %247 = sbr.rel (%p245) target = $region16
      $region15: #{mlp_forward.4} parent=11 // pred_region
        _
      $region16: #{mlp_forward.4} parent=11 // pred_fallthru
        _
      // Predicated region
      $region17: #{mlp_forward.4} parent=11 // pred_check
        %p248 = pneg %p69
      $region18: #{mlp_forward.4} parent=11 // pred_check_branch
        %250 = sbr.rel (%p248) target = $region20
      $region19: #{mlp_forward.4} parent=11 // pred_region
        _
      $region20: #{mlp_forward.4} parent=11 // pred_fallthru
        _
      // Predicated region
      $region21: #{mlp_forward.4} parent=11 // pred_check
        %p251 = pneg %p90
      $region22: #{mlp_forward.4} parent=11 // pred_check_branch
        %253 = sbr.rel (%p251) target = $region24
      $region23: #{mlp_forward.4} parent=11 // pred_region
        _
      $region24: #{mlp_forward.4} parent=11 // pred_fallthru
        _
      // Predicated region
      $region25: #{mlp_forward.4} parent=11 // pred_check
        %p254 = pneg %p111
      $region26: #{mlp_forward.4} parent=11 // pred_check_branch
        %256 = sbr.rel (%p254) target = $region28
      $region27: #{mlp_forward.4} parent=11 // pred_region
        _
      $region28: #{mlp_forward.4} parent=11 // pred_fallthru
        _
      // Predicated region
      $region29: #{mlp_forward.4} parent=11 // pred_check
        %p257 = pneg %p160
      $region30: #{mlp_forward.4} parent=11 // pred_check_branch
        %259 = sbr.rel (%p257) target = $region32
      $region31: #{mlp_forward.4} parent=11 // pred_region
        _
      $region32: #{mlp_forward.4} parent=11 // pred_fallthru
        _
    $region12: #{mlp_forward.4} parent=5 // pred_fallthru
      _
    %p260 = scmp.lt.s32.totalorder %s15, 2
    // Predicated region
    $region33: #{mlp_forward.4} parent=5 // pred_check
      %p261 = pneg %p260
    $region34: #{mlp_forward.4} parent=5 // pred_check_branch
      %263 = sbr.rel (%p261) target = $region36
    $region35: #{mlp_forward.4} parent=5 // pred_region
      // Predicated region
      $region37: #{mlp_forward.4} parent=35 // pred_check
        %p264 = pneg %p133
      $region38: #{mlp_forward.4} parent=35 // pred_check_branch
        %266 = sbr.rel (%p264) target = $region40
      $region39: #{mlp_forward.4} parent=35 // pred_region
        %p267 = scmp.lt.s32.totalorder %s22, 1
        %s268 = scalar_select %p267, %s22, 1
        %p269 = scmp.lt.s32.totalorder %s23, 0
        %s270 = scalar_select %p269, %s23, 0
        %s271 = smul.addr %s268, 2
        %s272 = sadd.s32 %s270, %s271
        %s273 = smul.addr %s272, 8
        %s274 = scalar_lea.vmem %s4, %s273
      $region40: #{mlp_forward.4} parent=35 // pred_fallthru
        _
    $region36: #{mlp_forward.4} parent=5 // pred_fallthru
      _
    %p275 = scmp.le.s32.totalorder 1, %s15
    %p276 = scmp.lt.s32.totalorder %s15, 3
    %p277 = pnand %p275, %p276
    %p278 = pneg %p277
    // Predicated region
    $region41: #{mlp_forward.4} parent=5 // pred_check
      _
    $region42: #{mlp_forward.4} parent=5 // pred_check_branch
      %280 = sbr.rel (%p277) target = $region44
    $region43: #{mlp_forward.4} parent=5 // pred_region
      %s281 = ssub.s32 %s15, 1
      %p282 = pneg %p48
      %p283 = pneg %p45
      %p284 = pneg %p69
      %p285 = pneg %p66
      %p286 = pneg %p90
      %p287 = pneg %p87
      %p288 = pneg %p111
      %p289 = pneg %p108
      %p290 = scmp.lt.s32.totalorder %s24, 1
      %s291 = scalar_select %p290, %s24, 1
      %p292 = scmp.lt.s32.totalorder %s25, 0
      %s293 = scalar_select %p292, %s25, 0
      %s294 = smul.addr %s291, 2
      %s295 = sadd.s32 %s293, %s294
      %s296 = smul.addr %s295, 8
      %s297 = scalar_lea.vmem %s4, %s296
      %p298 = pneg %p139
      %p299 = pneg %p136
      %p300 = pneg %p160
      %p301 = pneg %p157
      %p302 = pneg %p188
      %p303 = pneg %p185
      %p304 = scmp.lt.s32.totalorder %s24, 1
      %s305 = scalar_select %p304, %s24, 1
      %p306 = scmp.lt.s32.totalorder %s25, 0
      %s307 = scalar_select %p306, %s25, 0
      %s308 = smul.addr %s305, 4
      %s309 = sadd.s32 %s307, %s308
      %s310 = smul.addr %s309, 8
      %s311 = scalar_lea.vmem %s6, %s310
      %p312 = pneg %p209
      %p313 = pneg %p206
      %p314 = pneg %p230
      %p315 = pneg %p227
      %p316 = scmp.lt.s32.totalorder %s24, 1
      %s317 = scalar_select %p316, %s24, 1
      %p318 = scmp.lt.s32.totalorder %s25, 0
      %s319 = scalar_select %p318, %s25, 0
      %s320 = smul.addr %s317, 2
      %s321 = sadd.s32 %s319, %s320
      %s322 = smul.addr %s321, 8
      %s323 = scalar_lea.vmem %s4, %s322
      %p324 = scmp.lt.s32.totalorder %s24, 1
      %s325 = scalar_select %p324, %s24, 1
      %p326 = scmp.lt.s32.totalorder %s25, 0
      %s327 = scalar_select %p326, %s25, 0
      %s328 = smul.addr %s325, 4
      %s329 = sadd.s32 %s327, %s328
      %s330 = smul.addr %s329, 8
      %s331 = scalar_lea.vmem %s6, %s330
      %p332 = scmp.eq.s32.totalorder %s24, 0
      %p333 = scmp.eq.s32.totalorder %s25, 0
      %p334 = pnand %p332, %p333
      %p335 = pneg %p334
      // Predicated region
      $region45: #{mlp_forward.4} parent=43 // pred_check
        _
      $region46: #{mlp_forward.4} parent=43 // pred_check_branch
        %337 = sbr.rel (%p334) target = $region48
      $region47: #{mlp_forward.4} parent=43 // pred_region
        %vm338 = vcmask 7168
        %339 = vst.msk [vmem:[%s7] sm:$0xff] %vm338, 0.0
        %340 = vst.msk [vmem:[%s7 + $0x8] sm:$0xff] %vm338, 0.0
        %341 = vst.msk [vmem:[%s7 + $0x10] sm:$0xff] %vm338, 0.0
        %342 = vst.msk [vmem:[%s7 + $0x18] sm:$0xff] %vm338, 0.0
        %343 = vst.msk [vmem:[%s8] sm:$0xff] %vm338, 0.0
        %344 = vst.msk [vmem:[%s8 + $0x8] sm:$0xff] %vm338, 0.0
        %345 = vst.msk [vmem:[%s8 + $0x10] sm:$0xff] %vm338, 0.0
        %346 = vst.msk [vmem:[%s8 + $0x18] sm:$0xff] %vm338, 0.0
      $region48: #{mlp_forward.4} parent=43 // pred_fallthru
        _
      %v347 = vld [vmem:[%s0] sm:$0xff]
      %v348 = vld [vmem:[%s0 + $0x8] sm:$0xff]
      %v349 = vld [vmem:[%s1] sm:$0xff]
      %v350 = vld [vmem:[%s1 + $0x8] sm:$0xff]
      %v351 = vld [vmem:[%s2] sm:$0xff]
      %v352 = vld [vmem:[%s2 + $0x8] sm:$0xff]
      %v353 = vld [vmem:[%s3] sm:$0xff]
      %v354 = vld [vmem:[%s3 + $0x8] sm:$0xff]
      %v355 = vmul.f32 %v347, 0.03125
      %v356 = vmul.f32 %v348, 0.03125
      %v357 = vmul.f32 %v349, 0.03125
      %v358 = vmul.f32 %v350, 0.03125
      %v359 = vmul.f32 %v355, %v355
      %v360 = vmul.f32 %v356, %v356
      %v361 = vsub.f32 %v357, %v359
      %v362 = vsub.f32 %v358, %v360
      %v363 = vmax.f32 %v361, 0.0
      %v364 = vmax.f32 %v362, 0.0
      %v365 = vadd.f32 %v363, 1e-05
      %v366 = vadd.f32 %v364, 1e-05
      %v367 = vrsqrt.pop %v365
      %v368 = vrsqrt.pop %v366
      %v369 = vmul.f32 %v351, %v367
      %v370 = vmul.f32 %v352, %v368
      %v371 = vmul.f32 %v355, %v369
      %v372 = vmul.f32 %v356, %v370
      %v373 = vsub.f32 %v353, %v371
      %v374 = vsub.f32 %v354, %v372
      %v375 = vld [vmem:[%s323] sm:$0xff]
      %v376 = vld [vmem:[%s323 + $0x8] sm:$0xff]
      %378 = vset.pattern.permute.xlu0 0
      %379 = vperm.xlu0 %378, %v369
      %v380 = vpop.permute.xlu0 %379
      %383 = vset.pattern.permute.xlu0 0
      %384 = vperm.xlu0 %383, %v370
      %v385 = vpop.permute.xlu0 %384
      %v387 = vmul.f32 %v375, %v380
      %v388 = vmul.f32 %v376, %v385
      %390 = vset.pattern.permute.xlu0 0
      %391 = vperm.xlu0 %390, %v373
      %v392 = vpop.permute.xlu0 %391
      %395 = vset.pattern.permute.xlu0 0
      %396 = vperm.xlu0 %395, %v374
      %v397 = vpop.permute.xlu0 %396
      %v399 = vadd.f32 %v387, %v392
      %v400 = vadd.f32 %v388, %v397
      %v401 = vmax.f32 %v399, 0.0
      %v402 = vmax.f32 %v400, 0.0
      %v403 = vld [vmem:[%s5] sm:$0xff]
      %v404 = vld [vmem:[%s5 + $0x8] sm:$0xff]
      %v405 = vld [vmem:[%s5 + $0x10] sm:$0xff]
      %v406 = vld [vmem:[%s5 + $0x18] sm:$0xff]
      %vm407 = vcmask 130048
      %v409 = vsel %vm407, %v403, 0
      %v412 = vsel %vm407, %v404, 0
      %v415 = vsel %vm407, %v405, 0
      %v418 = vsel %vm407, %v406, 0
      %420 = vmatprep.subr.mxu0 0.0
      %421 = vmatpush1.msra.mxu0 %v401
      %422 = vmatprep.subr.mxu0 0.0
      %423 = vmatpush1.msra.mxu0 %v402
      %424 = vmatprep.subr.mxu0 0.0
      %425 = vmatpush1.msra.mxu0 0.0
      %426 = vmatprep.subr.mxu0 0.0
      %427 = vmatpush1.msra.mxu0 0.0
      %428 = vmatprep.subr.mxu0 0.0
      %429 = vmatpush1.msra.mxu0 0.0
      %430 = vmatprep.subr.mxu0 0.0
      %431 = vmatpush1.msra.mxu0 0.0
      %432 = vmatprep.subr.mxu0 0.0
      %433 = vmatpush1.msra.mxu0 0.0
      %434 = vmatprep.subr.mxu0 0.0
      %435 = vmatpush1.msra.mxu0 0.0
      %436 = vmatprep.subr.mxu0 0.0
      %437 = vmatpush1.msra.mxu0 0.0
      %438 = vmatprep.subr.mxu0 0.0
      %439 = vmatpush1.msra.mxu0 0.0
      %440 = vmatprep.subr.mxu0 0.0
      %441 = vmatpush1.msra.mxu0 0.0
      %442 = vmatprep.subr.mxu0 0.0
      %443 = vmatpush1.msra.mxu0 0.0
      %444 = vmatprep.subr.mxu0 0.0
      %445 = vmatpush1.msra.mxu0 0.0
      %446 = vmatprep.subr.mxu0 0.0
      %447 = vmatpush1.msra.mxu0 0.0
      %448 = vmatprep.subr.mxu0 0.0
      %449 = vmatpush1.msra.mxu0 0.0
      %450 = vmatprep.subr.mxu0 0.0
      %451 = vmatpush1.msra.mxu0 0.0
      %452 = vmatprep.subr.mxu0 0.0
      %453 = vmatpush1.msra.mxu0 0.0
      %454 = vmatprep.subr.mxu0 0.0
      %455 = vmatpush1.msra.mxu0 0.0
      %456 = vmatprep.subr.mxu0 0.0
      %457 = vmatpush1.msra.mxu0 0.0
      %458 = vmatprep.subr.mxu0 0.0
      %459 = vmatpush1.msra.mxu0 0.0
      %460 = vmatprep.subr.mxu0 0.0
      %461 = vmatpush1.msra.mxu0 0.0
      %462 = vmatprep.subr.mxu0 0.0
      %463 = vmatpush1.msra.mxu0 0.0
      %464 = vmatprep.subr.mxu0 0.0
      %465 = vmatpush1.msra.mxu0 0.0
      %466 = vmatprep.subr.mxu0 0.0
      %467 = vmatpush1.msra.mxu0 0.0
      %468 = vmatprep.subr.mxu0 0.0
      %469 = vmatpush1.msra.mxu0 0.0
      %470 = vmatprep.subr.mxu0 0.0
      %471 = vmatpush1.msra.mxu0 0.0
      %472 = vmatprep.subr.mxu0 0.0
      %473 = vmatpush1.msra.mxu0 0.0
      %474 = vmatprep.subr.mxu0 0.0
      %475 = vmatpush1.msra.mxu0 0.0
      %476 = vmatprep.subr.mxu0 0.0
      %477 = vmatpush1.msra.mxu0 0.0
      %478 = vmatprep.subr.mxu0 0.0
      %479 = vmatpush1.msra.mxu0 0.0
      %480 = vmatprep.subr.mxu0 0.0
      %481 = vmatpush1.msra.mxu0 0.0
      %482 = vmatprep.subr.mxu0 0.0
      %483 = vmatpush1.msra.mxu0 0.0
      %484 = vmatprep.mubr.f32.mxu0 0.0
      %485 = vmatmul.mubr.f32.gmra.mrb[0].mxu0 %v409
      %v486 = vpop.f32.mrb[0].mxu0
      %v487 = vadd.f32 0.0, %v486
      %v488 = vpop.f32.mrb[0].mxu0
      %489 = vmatprep.mubr.f32.mxu0 0.0
      %490 = vmatmul.mubr.f32.gmra.mrb[0].mxu0 %v412
      %v491 = vpop.f32.mrb[0].mxu0
      %v492 = vadd.f32 0.0, %v491
      %v493 = vpop.f32.mrb[0].mxu0
      %494 = vmatprep.mubr.f32.mxu0 0.0
      %495 = vmatmul.mubr.f32.gmra.mrb[0].mxu0 %v415
      %v496 = vpop.f32.mrb[0].mxu0
      %v497 = vadd.f32 0.0, %v496
      %v498 = vpop.f32.mrb[0].mxu0
      %499 = vmatprep.mubr.f32.mxu0 0.0
      %500 = vmatmul.mubr.f32.gmra.mrb[0].mxu0 %v418
      %v501 = vpop.f32.mrb[0].mxu0
      %v502 = vadd.f32 0.0, %v501
      %v503 = vpop.f32.mrb[0].mxu0
      %504 = vdwg.mxu0
      %505 = vst.msk [vmem:[%s331] sm:$0xff] %vm407, %v487
      %506 = vst.msk [vmem:[%s331 + $0x8] sm:$0xff] %vm407, %v492
      %507 = vst.msk [vmem:[%s331 + $0x10] sm:$0xff] %vm407, %v497
      %508 = vst.msk [vmem:[%s331 + $0x18] sm:$0xff] %vm407, %v502
      %v509 = vld [vmem:[%s7] sm:$0xff]
      %v510 = vld [vmem:[%s7 + $0x8] sm:$0xff]
      %v511 = vld [vmem:[%s7 + $0x10] sm:$0xff]
      %v512 = vld [vmem:[%s7 + $0x18] sm:$0xff]
      %v513 = vsel %vm407, %v487, 0.0
      %514 = vadd.xlane.f32.xlu0 %v513
      %v515 = vpop.xlane.xlu0 %514
      %v516 = vsel %vm407, %v492, 0.0
      %517 = vadd.xlane.f32.xlu0 %v516
      %v518 = vpop.xlane.xlu0 %517
      %v519 = vsel %vm407, %v497, 0.0
      %520 = vadd.xlane.f32.xlu0 %v519
      %v521 = vpop.xlane.xlu0 %520
      %v522 = vsel %vm407, %v502, 0.0
      %523 = vadd.xlane.f32.xlu0 %v522
      %v524 = vpop.xlane.xlu0 %523
      %v525 = vadd.f32 %v509, %v515
      %v526 = vadd.f32 %v510, %v518
      %v527 = vadd.f32 %v511, %v521
      %v528 = vadd.f32 %v512, %v524
      %vm529 = vcmask 7168
      %530 = vst.msk [vmem:[%s7] sm:$0xff] %vm529, %v525
      %531 = vst.msk [vmem:[%s7 + $0x8] sm:$0xff] %vm529, %v526
      %532 = vst.msk [vmem:[%s7 + $0x10] sm:$0xff] %vm529, %v527
      %533 = vst.msk [vmem:[%s7 + $0x18] sm:$0xff] %vm529, %v528
      %v534 = vld [vmem:[%s8] sm:$0xff]
      %v535 = vld [vmem:[%s8 + $0x8] sm:$0xff]
      %v536 = vld [vmem:[%s8 + $0x10] sm:$0xff]
      %v537 = vld [vmem:[%s8 + $0x18] sm:$0xff]
      %v538 = vmul.f32 %v487, %v487
      %v539 = vmul.f32 %v492, %v492
      %v540 = vmul.f32 %v497, %v497
      %v541 = vmul.f32 %v502, %v502
      %v542 = vsel %vm407, %v538, 0.0
      %543 = vadd.xlane.f32.xlu0 %v542
      %v544 = vpop.xlane.xlu0 %543
      %v545 = vsel %vm407, %v539, 0.0
      %546 = vadd.xlane.f32.xlu0 %v545
      %v547 = vpop.xlane.xlu0 %546
      %v548 = vsel %vm407, %v540, 0.0
      %549 = vadd.xlane.f32.xlu0 %v548
      %v550 = vpop.xlane.xlu0 %549
      %v551 = vsel %vm407, %v541, 0.0
      %552 = vadd.xlane.f32.xlu0 %v551
      %v553 = vpop.xlane.xlu0 %552
      %v554 = vadd.f32 %v534, %v544
      %v555 = vadd.f32 %v535, %v547
      %v556 = vadd.f32 %v536, %v550
      %v557 = vadd.f32 %v537, %v553
      %558 = vst.msk [vmem:[%s8] sm:$0xff] %vm529, %v554
      %559 = vst.msk [vmem:[%s8 + $0x8] sm:$0xff] %vm529, %v555
      %560 = vst.msk [vmem:[%s8 + $0x10] sm:$0xff] %vm529, %v556
      %561 = vst.msk [vmem:[%s8 + $0x18] sm:$0xff] %vm529, %v557
      %p562 = scmp.lt.s32.totalorder %s24, 1
      %s563 = scalar_select %p562, %s24, 1
      %p564 = scmp.lt.s32.totalorder %s25, 0
      %s565 = scalar_select %p564, %s25, 0
      %s566 = smul.addr %s563, 4
      %s567 = sadd.s32 %s565, %s566
      %s568 = smul.addr %s567, 8
      %s569 = scalar_lea.vmem %s6, %s568
      // Predicated region
      $region49: #{mlp_forward.4} parent=43 // pred_check
        %p570 = pneg %p185
      $region50: #{mlp_forward.4} parent=43 // pred_check_branch
        %572 = sbr.rel (%p570) target = $region52
      $region51: #{mlp_forward.4} parent=43 // pred_region
        _
      $region52: #{mlp_forward.4} parent=43 // pred_fallthru
        _
      // Predicated region
      $region53: #{mlp_forward.4} parent=43 // pred_check
        %p573 = pneg %p206
      $region54: #{mlp_forward.4} parent=43 // pred_check_branch
        %575 = sbr.rel (%p573) target = $region56
      $region55: #{mlp_forward.4} parent=43 // pred_region
        _
      $region56: #{mlp_forward.4} parent=43 // pred_fallthru
        _
      // Predicated region
      $region57: #{mlp_forward.4} parent=43 // pred_check
        %p576 = pneg %p227
      $region58: #{mlp_forward.4} parent=43 // pred_check_branch
        %578 = sbr.rel (%p576) target = $region60
      $region59: #{mlp_forward.4} parent=43 // pred_region
        _
      $region60: #{mlp_forward.4} parent=43 // pred_fallthru
        _
      // Predicated region
      $region61: #{mlp_forward.4} parent=43 // pred_check
        %p579 = pneg %p206
      $region62: #{mlp_forward.4} parent=43 // pred_check_branch
        %581 = sbr.rel (%p579) target = $region64
      $region63: #{mlp_forward.4} parent=43 // pred_region
        _
      $region64: #{mlp_forward.4} parent=43 // pred_fallthru
        _
      // Predicated region
      $region65: #{mlp_forward.4} parent=43 // pred_check
        %p582 = pneg %p227
      $region66: #{mlp_forward.4} parent=43 // pred_check_branch
        %584 = sbr.rel (%p582) target = $region68
      $region67: #{mlp_forward.4} parent=43 // pred_region
        _
      $region68: #{mlp_forward.4} parent=43 // pred_fallthru
        _
    $region44: #{mlp_forward.4} parent=5 // pred_fallthru
      _
    %p585 = scmp.le.s32.totalorder 2, %s15
    // Predicated region
    $region69: #{mlp_forward.4} parent=5 // pred_check
      %p586 = pneg %p585
    $region70: #{mlp_forward.4} parent=5 // pred_check_branch
      %588 = sbr.rel (%p586) target = $region72
    $region71: #{mlp_forward.4} parent=5 // pred_region
      %s589 = ssub.s32 %s15, 2
      // Predicated region
      $region73: #{mlp_forward.4} parent=71 // pred_check
        %p590 = pneg %p191
      $region74: #{mlp_forward.4} parent=71 // pred_check_branch
        %592 = sbr.rel (%p590) target = $region76
      $region75: #{mlp_forward.4} parent=71 // pred_region
        %p593 = scmp.lt.s32.totalorder %s26, 1
        %s594 = scalar_select %p593, %s26, 1
        %p595 = scmp.lt.s32.totalorder %s27, 0
        %s596 = scalar_select %p595, %s27, 0
        %s597 = smul.addr %s594, 4
        %s598 = sadd.s32 %s596, %s597
        %s599 = smul.addr %s598, 8
        %s600 = scalar_lea.vmem %s6, %s599
      $region76: #{mlp_forward.4} parent=71 // pred_fallthru
        _
    $region72: #{mlp_forward.4} parent=5 // pred_fallthru
      _
  $region6: #{mlp_forward.4} parent=0 // loop_footer
    %s19 = sadd.s32 1, %s15
  $region7: #{mlp_forward.4} parent=0 // loop_footer_branch
    %14 = sbr.rel target = $region3
  $region8: #{mlp_forward.4} parent=0 // loop_exit
    _

</llo_original>
